<compile_context>
chip_gen: v5e
topology: v5e:2x2
jax: 0.10.0
libtpu: 0.0.40
codegen_flags: <defaults>
</compile_context>

<pallas_src>
import functools

import jax
import jax.numpy as jnp
import numpy as np
from jax.experimental import pallas as pl
from jax.experimental.pallas import tpu as pltpu


def _round_up(x, m):
    return (x + m - 1) // m * m


def _pick_tile(dim, candidates):
    for c in candidates:
        if dim >= c and dim % c == 0:
            return c
    return dim  # dims are padded to multiples of 128, so this is only hit at dim


def _pick_row_tile(n_p):
    """Largest row tile (<=512) that still leaves >=2 dst tiles (v7x megacore)."""
    for c in (512, 256, 128):
        if n_p % c == 0 and n_p // c >= 2:
            return c
    return n_p  # single tile (n_p == 128)


# ----------------------------------------------------------------------------
# Kernel 1a: feature projection with VMEM-resident weights (no reduction axis)
#   Z = X @ W_t     X, W bf16; f32 MXU accumulation; bf16 output
# ----------------------------------------------------------------------------
def _proj_kernel_resident(x_ref, w_ref, o_ref):
    o_ref[...] = jnp.dot(x_ref[...], w_ref[...],
                         preferred_element_type=jnp.float32).astype(o_ref.dtype)


# ----------------------------------------------------------------------------
# Kernel 1b: K-tiled projection fallback (large in_feats)
# ----------------------------------------------------------------------------
def _proj_kernel_acc(x_ref, w_ref, o_ref, acc_ref):
    kk = pl.program_id(1)

    @pl.when(kk == 0)
    def _():
        acc_ref[...] = jnp.zeros_like(acc_ref)

    acc_ref[...] += jnp.dot(x_ref[...], w_ref[...],
                            preferred_element_type=jnp.float32)

    @pl.when(kk == pl.num_programs(1) - 1)
    def _():
        o_ref[...] = acc_ref[...].astype(o_ref.dtype)


def _project(x_bf16, w_t_bf16, *, tm):
    n, fi = x_bf16.shape
    fo = w_t_bf16.shape[1]

    # Resident-weight path: W stays in VMEM (constant index_map => no re-DMA),
    # one dot per grid step, no scratch / init / finalize.
    resident = (fi * fo * 2) <= (8 << 20) and (tm * fi * 2) <= (8 << 20)

    if resident:
        return pl.pallas_call(
            _proj_kernel_resident,
            out_shape=jax.ShapeDtypeStruct((n, fo), jnp.bfloat16),
            grid_spec=pltpu.PrefetchScalarGridSpec(
                num_scalar_prefetch=0,
                grid=(n // tm,),
                in_specs=[
                    pl.BlockSpec((tm, fi), lambda i: (i, 0)),   # X tile (bf16)
                    pl.BlockSpec((fi, fo), lambda i: (0, 0)),   # W resident (bf16)
                ],
                out_specs=pl.BlockSpec((tm, fo), lambda i: (i, 0)),
            ),
            compiler_params=pltpu.CompilerParams(
                dimension_semantics=("parallel",)),
            cost_estimate=pl.CostEstimate(
                flops=2 * n * fi * fo,
                transcendentals=0,
                bytes_accessed=2 * (n * fi + fi * fo + n * fo)),
        )(x_bf16, w_t_bf16)

    tk = _pick_tile(fi, (2048, 1024, 512, 256, 128))
    return pl.pallas_call(
        _proj_kernel_acc,
        out_shape=jax.ShapeDtypeStruct((n, fo), jnp.bfloat16),
        grid_spec=pltpu.PrefetchScalarGridSpec(
            num_scalar_prefetch=0,
            grid=(n // tm, fi // tk),
            in_specs=[
                pl.BlockSpec((tm, tk), lambda i, k: (i, k)),
                pl.BlockSpec((tk, fo), lambda i, k: (k, 0)),
            ],
            out_specs=pl.BlockSpec((tm, fo), lambda i, k: (i, 0)),
            scratch_shapes=[pltpu.VMEM((tm, fo), jnp.float32)],
        ),
        compiler_params=pltpu.CompilerParams(
            dimension_semantics=("parallel", "arbitrary")),
        cost_estimate=pl.CostEstimate(
            flops=2 * n * fi * fo,
            transcendentals=0,
            bytes_accessed=2 * (n * fi + fi * fo + n * fo)),
    )(x_bf16, w_t_bf16)


# ----------------------------------------------------------------------------
# Kernel 2: one propagation hop  H_out = A_norm @ H   [+ b on the last hop]
#   - A_norm already carries the symmetric normalization (folded in wrapper)
#   - A, H tiles are bf16; f32 accumulation in VMEM scratch
#   - inner loop is a single MXU dot (strictly MXU + DMA bound)
#   - bias fused into the final-k epilogue of the LAST hop only
# ----------------------------------------------------------------------------
def _hop_kernel(a_ref, h_ref, bias_ref, o_ref, acc_ref, *, add_bias):
    kk = pl.program_id(1)

    @pl.when(kk == 0)
    def _():
        acc_ref[...] = jnp.zeros_like(acc_ref)

    acc_ref[...] += jnp.dot(a_ref[...], h_ref[...],
                            preferred_element_type=jnp.float32)

    @pl.when(kk == pl.num_programs(1) - 1)
    def _():
        out = acc_ref[...]
        if add_bias:
            out = out + bias_ref[...]
        o_ref[...] = out.astype(o_ref.dtype)


def _propagate(a_bf16, h_bf16, bias, *, add_bias, last, tm, tk):
    n = a_bf16.shape[0]
    fo = h_bf16.shape[1]
    out_dtype = jnp.float32 if last else jnp.bfloat16
    kernel = functools.partial(_hop_kernel, add_bias=add_bias)
    return pl.pallas_call(
        kernel,
        out_shape=jax.ShapeDtypeStruct((n, fo), out_dtype),
        grid_spec=pltpu.PrefetchScalarGridSpec(
            num_scalar_prefetch=0,
            grid=(n // tm, n // tk),
            in_specs=[
                pl.BlockSpec((tm, tk), lambda i, k: (i, k)),  # A_norm (bf16)
                pl.BlockSpec((tk, fo), lambda i, k: (k, 0)),  # H (bf16)
                pl.BlockSpec((1, fo), lambda i, k: (0, 0)),   # bias (f32, tiny)
            ],
            out_specs=pl.BlockSpec((tm, fo), lambda i, k: (i, 0)),
            scratch_shapes=[pltpu.VMEM((tm, fo), jnp.float32)],
        ),
        compiler_params=pltpu.CompilerParams(
            dimension_semantics=("parallel", "arbitrary")),
        cost_estimate=pl.CostEstimate(
            flops=2 * n * n * fo,
            transcendentals=0,
            bytes_accessed=2 * n * n + 2 * n * fo * (n // tm)
            + np.dtype(out_dtype).itemsize * n * fo),
    )(a_bf16, h_bf16, bias)


# ----------------------------------------------------------------------------
# SGC forward wrapper
# ----------------------------------------------------------------------------
@functools.partial(jax.jit, static_argnames=("k",))
def sgc_forward(adj, x, weight, bias, k=2):
    """SGC forward: out = (D^-1/2 A D^-1/2)^k X W^T + b.

    adj:    [N, N] dense adjacency, adj[dst, src] = edge weight (0 => no edge)
    x:      [N, F_in] node features
    weight: [F_out, F_in]  (torch.nn.Linear layout)
    bias:   [F_out]
    """
    n, f_in = x.shape
    f_out = weight.shape[0]

    # ---- one-shot XLA preprocessing ----------------------------------------
    # Unweighted in-degree (edges with exactly-zero weight count as absent).
    deg = jnp.sum((adj != 0).astype(jnp.float32), axis=1)
    norm = jax.lax.rsqrt(jnp.maximum(deg, 1.0))                  # [N]

    n_p = _round_up(n, 128)
    fi_p = _round_up(f_in, 128)
    fo_p = _round_up(f_out, 128)   # lane-dense output; intentionally NOT 256

    # Fold the symmetric normalization into A, cast to bf16 BEFORE padding
    # (avoids an f32 N_p^2 padded intermediate), then zero-pad.
    a_norm = (adj * norm[:, None] * norm[None, :]).astype(jnp.bfloat16)
    a_p = jnp.pad(a_norm, ((0, n_p - n), (0, n_p - n)))

    x_p = jnp.pad(x.astype(jnp.bfloat16), ((0, n_p - n), (0, fi_p - f_in)))
    wt_p = jnp.pad(weight.T.astype(jnp.bfloat16),
                   ((0, fi_p - f_in), (0, fo_p - f_out)))
    b_p = jnp.pad(bias.astype(jnp.float32), (0, fo_p - f_out))[None, :]

    tm = _pick_row_tile(n_p)                                   # >=2 dst tiles
    tk_n = _pick_tile(n_p, (2048, 1024, 512, 256, 128))        # reduction tile

    # Project first so both N x N hops run at width fo_p (=128 typically).
    h = _project(x_p, wt_p, tm=tm)                             # bf16 [n_p, fo_p]

    if k == 0:
        # Degenerate case: plain linear layer.
        return (h.astype(jnp.float32) + b_p)[:n, :f_out]

    # TODO(synk): for graphs whose bf16 A fits VMEM, a single pallas_call with
    # a resident A reused across all k hops would halve A's HBM traffic.
    for hop in range(k):
        last = (hop == k - 1)
        h = _propagate(a_p, h, b_p, add_bias=last, last=last, tm=tm, tk=tk_n)
    return h[:n, :f_out]


if __name__ == "__main__":
    key = jax.random.PRNGKey(0)
    k_mask, k_wts, k_x, k_w, k_b = jax.random.split(key, 5)

    N, F_IN, F_OUT, K = 200, 200, 10, 2

    # Random sparse-ish weighted adjacency, A[dst, src]
    mask = (jax.random.uniform(k_mask, (N, N)) < 0.05).astype(jnp.float32)
    wts = jax.random.uniform(k_wts, (N, N), minval=0.5, maxval=1.5)
    adj = mask * wts

    x = jax.random.normal(k_x, (N, F_IN), dtype=jnp.float32)
    weight = jax.random.normal(k_w, (F_OUT, F_IN), dtype=jnp.float32) / np.sqrt(F_IN)
    bias = 0.1 * jax.random.normal(k_b, (F_OUT,), dtype=jnp.float32)

    out = jax.block_until_ready(sgc_forward(adj, x, weight, bias, k=K))

    # Pure-JAX f32 reference with the original (propagate-then-project) order.
    deg = jnp.sum((adj != 0).astype(jnp.float32), axis=1)
    nrm = jax.lax.rsqrt(jnp.maximum(deg, 1.0))[:, None]
    h_ref = x
    for _ in range(K):
        h_ref = nrm * (adj @ (nrm * h_ref))
    ref = h_ref @ weight.T + bias[None, :]

    assert out.shape == (N, F_OUT)
    rel_err = jnp.linalg.norm(out - ref) / jnp.linalg.norm(ref)
    assert float(rel_err) < 5e-2, f"relative error too large: {rel_err}"
    print("KERNEL_OK")
</pallas_src>

<mosaic_0001>
module attributes {stable_mosaic.version = 11 : i64} {
  func.func @_proj_kernel_resident(%arg0: i32, %arg1: memref<128x256xbf16, #tpu.memory_space<vmem>>, %arg2: memref<256x128xbf16, #tpu.memory_space<vmem>>, %arg3: memref<128x128xbf16, #tpu.memory_space<vmem>>) attributes {dimension_semantics = [#tpu.dimension_semantics<parallel>], iteration_bounds = array<i64: 2>, scalar_prefetch = 0 : i64, scratch_operands = 0 : i64, tpu.core_type = #tpu.core_type<tc>, window_params = [{transform_indices = @transform_0, window_bounds = array<i64: 128, 256>}, {pipeline_mode = #tpu.pipeline_mode<synchronous>, transform_indices = @transform_1, window_bounds = array<i64: 256, 128>}, {transform_indices = @transform_2, window_bounds = array<i64: 128, 128>}]} {
    %c0 = arith.constant 0 : index
    %c0_0 = arith.constant 0 : index
    %0 = vector.load %arg1[%c0, %c0_0] : memref<128x256xbf16, #tpu.memory_space<vmem>>, vector<128x256xbf16>
    %c0_1 = arith.constant 0 : index
    %c0_2 = arith.constant 0 : index
    %1 = vector.load %arg2[%c0_1, %c0_2] : memref<256x128xbf16, #tpu.memory_space<vmem>>, vector<256x128xbf16>
    %cst = arith.constant dense<0.000000e+00> : vector<128x128xf32>
    %2 = tpu.matmul %0, %1, %cst {dimension_numbers = #tpu.dot_dimension_numbers<[1], [0], [0], [1], [0, 0, 1, 1], [], []>} : vector<128x256xbf16>, vector<256x128xbf16>, vector<128x128xf32> -> vector<128x128xf32>
    %3 = arith.truncf %2 : vector<128x128xf32> to vector<128x128xbf16>
    %c0_3 = arith.constant 0 : index
    %c0_4 = arith.constant 0 : index
    %4 = vector.load %arg3[%c0_3, %c0_4] : memref<128x128xbf16, #tpu.memory_space<vmem>>, vector<128x128xbf16>
    tpu.vector_store %arg3[%c0_3, %c0_4], %3 {strides = array<i32>} : memref<128x128xbf16, #tpu.memory_space<vmem>>, vector<128x128xbf16>,
    return
  }
  func.func @transform_0(%arg0: i32) -> (i32, i32) {
    %c0_i32 = arith.constant 0 : i32
    %c0_i32_0 = arith.constant 0 : i32
    return %arg0, %c0_i32 : i32, i32
  }
  func.func @transform_1(%arg0: i32) -> (i32, i32) {
    %c0_i32 = arith.constant 0 : i32
    %c0_i32_0 = arith.constant 0 : i32
    %c0_i32_1 = arith.constant 0 : i32
    return %c0_i32, %c0_i32_0 : i32, i32
  }
  func.func @transform_2(%arg0: i32) -> (i32, i32) {
    %c0_i32 = arith.constant 0 : i32
    %c0_i32_0 = arith.constant 0 : i32
    return %arg0, %c0_i32 : i32, i32
  }
}

module attributes {stable_mosaic.version = 11 : i64} {
  func.func @_hop_kernel(%arg0: i32, %arg1: i32, %arg2: memref<128x256xbf16, #tpu.memory_space<vmem>>, %arg3: memref<256x128xbf16, #tpu.memory_space<vmem>>, %arg4: memref<1x128xf32, #tpu.memory_space<vmem>>, %arg5: memref<128x128xbf16, #tpu.memory_space<vmem>>, %arg6: memref<128x128xf32, #tpu.memory_space<vmem>>) attributes {dimension_semantics = [#tpu.dimension_semantics<parallel>, #tpu.dimension_semantics<arbitrary>], iteration_bounds = array<i64: 2, 1>, scalar_prefetch = 0 : i64, scratch_operands = 1 : i64, tpu.core_type = #tpu.core_type<tc>, window_params = [{transform_indices = @transform_0, window_bounds = array<i64: 128, 256>}, {transform_indices = @transform_1, window_bounds = array<i64: 256, 128>}, {pipeline_mode = #tpu.pipeline_mode<synchronous>, transform_indices = @transform_2, window_bounds = array<i64: 1, 128>}, {transform_indices = @transform_3, window_bounds = array<i64: 128, 128>}]} {
    %c0_i32 = arith.constant 0 : i32
    %0 = arith.cmpi eq, %arg1, %c0_i32 : i32
    %1 = arith.extui %0 : i1 to i32
    %c0_i32_0 = arith.constant 0 : i32
    %2 = arith.cmpi ne, %1, %c0_i32_0 : i32
    scf.if %2 {
      %cst_10 = arith.constant 0.000000e+00 : f32
      %12 = vector.broadcast %cst_10 : f32 to vector<128x128xf32>
      %c0_11 = arith.constant 0 : index
      %c0_12 = arith.constant 0 : index
      %13 = vector.load %arg6[%c0_11, %c0_12] : memref<128x128xf32, #tpu.memory_space<vmem>>, vector<128x128xf32>
      tpu.vector_store %arg6[%c0_11, %c0_12], %12 {strides = array<i32>} : memref<128x128xf32, #tpu.memory_space<vmem>>, vector<128x128xf32>,
    } else {
    }
    %c0 = arith.constant 0 : index
    %c0_1 = arith.constant 0 : index
    %3 = vector.load %arg6[%c0, %c0_1] : memref<128x128xf32, #tpu.memory_space<vmem>>, vector<128x128xf32>
    %c0_2 = arith.constant 0 : index
    %c0_3 = arith.constant 0 : index
    %4 = vector.load %arg2[%c0_2, %c0_3] : memref<128x256xbf16, #tpu.memory_space<vmem>>, vector<128x256xbf16>
    %c0_4 = arith.constant 0 : index
    %c0_5 = arith.constant 0 : index
    %5 = vector.load %arg3[%c0_4, %c0_5] : memref<256x128xbf16, #tpu.memory_space<vmem>>, vector<256x128xbf16>
    %cst = arith.constant dense<0.000000e+00> : vector<128x128xf32>
    %6 = tpu.matmul %4, %5, %cst {dimension_numbers = #tpu.dot_dimension_numbers<[1], [0], [0], [1], [0, 0, 1, 1], [], []>} : vector<128x256xbf16>, vector<256x128xbf16>, vector<128x128xf32> -> vector<128x128xf32>
    %7 = arith.addf %3, %6 : vector<128x128xf32>
    %c0_6 = arith.constant 0 : index
    %c0_7 = arith.constant 0 : index
    %8 = vector.load %arg6[%c0_6, %c0_7] : memref<128x128xf32, #tpu.memory_space<vmem>>, vector<128x128xf32>
    tpu.vector_store %arg6[%c0_6, %c0_7], %7 {strides = array<i32>} : memref<128x128xf32, #tpu.memory_space<vmem>>, vector<128x128xf32>,
    %c0_i32_8 = arith.constant 0 : i32
    %9 = arith.cmpi eq, %arg1, %c0_i32_8 : i32
    %10 = arith.extui %9 : i1 to i32
    %c0_i32_9 = arith.constant 0 : i32
    %11 = arith.cmpi ne, %10, %c0_i32_9 : i32
    scf.if %11 {
      %c0_10 = arith.constant 0 : index
      %c0_11 = arith.constant 0 : index
      %12 = vector.load %arg6[%c0_10, %c0_11] : memref<128x128xf32, #tpu.memory_space<vmem>>, vector<128x128xf32>
      %13 = arith.truncf %12 : vector<128x128xf32> to vector<128x128xbf16>
      %c0_12 = arith.constant 0 : index
      %c0_13 = arith.constant 0 : index
      %14 = vector.load %arg5[%c0_12, %c0_13] : memref<128x128xbf16, #tpu.memory_space<vmem>>, vector<128x128xbf16>
      tpu.vector_store %arg5[%c0_12, %c0_13], %13 {strides = array<i32>} : memref<128x128xbf16, #tpu.memory_space<vmem>>, vector<128x128xbf16>,
    } else {
    }
    return
  }
  func.func @transform_0(%arg0: i32, %arg1: i32) -> (i32, i32) {
    %c0_i32 = arith.constant 0 : i32
    return %arg0, %arg1 : i32, i32
  }
  func.func @transform_1(%arg0: i32, %arg1: i32) -> (i32, i32) {
    %c0_i32 = arith.constant 0 : i32
    %c0_i32_0 = arith.constant 0 : i32
    return %arg1, %c0_i32 : i32, i32
  }
  func.func @transform_2(%arg0: i32, %arg1: i32) -> (i32, i32) {
    %c0_i32 = arith.constant 0 : i32
    %c0_i32_0 = arith.constant 0 : i32
    %c0_i32_1 = arith.constant 0 : i32
    return %c0_i32, %c0_i32_0 : i32, i32
  }
  func.func @transform_3(%arg0: i32, %arg1: i32) -> (i32, i32) {
    %c0_i32 = arith.constant 0 : i32
    %c0_i32_0 = arith.constant 0 : i32
    return %arg0, %c0_i32 : i32, i32
  }
}

module attributes {stable_mosaic.version = 11 : i64} {
  func.func @_hop_kernel(%arg0: i32, %arg1: i32, %arg2: memref<128x256xbf16, #tpu.memory_space<vmem>>, %arg3: memref<256x128xbf16, #tpu.memory_space<vmem>>, %arg4: memref<1x128xf32, #tpu.memory_space<vmem>>, %arg5: memref<128x128xf32, #tpu.memory_space<vmem>>, %arg6: memref<128x128xf32, #tpu.memory_space<vmem>>) attributes {dimension_semantics = [#tpu.dimension_semantics<parallel>, #tpu.dimension_semantics<arbitrary>], iteration_bounds = array<i64: 2, 1>, scalar_prefetch = 0 : i64, scratch_operands = 1 : i64, tpu.core_type = #tpu.core_type<tc>, window_params = [{transform_indices = @transform_0, window_bounds = array<i64: 128, 256>}, {transform_indices = @transform_1, window_bounds = array<i64: 256, 128>}, {pipeline_mode = #tpu.pipeline_mode<synchronous>, transform_indices = @transform_2, window_bounds = array<i64: 1, 128>}, {transform_indices = @transform_3, window_bounds = array<i64: 128, 128>}]} {
    %c0_i32 = arith.constant 0 : i32
    %0 = arith.cmpi eq, %arg1, %c0_i32 : i32
    %1 = arith.extui %0 : i1 to i32
    %c0_i32_0 = arith.constant 0 : i32
    %2 = arith.cmpi ne, %1, %c0_i32_0 : i32
    scf.if %2 {
      %cst_10 = arith.constant 0.000000e+00 : f32
      %12 = vector.broadcast %cst_10 : f32 to vector<128x128xf32>
      %c0_11 = arith.constant 0 : index
      %c0_12 = arith.constant 0 : index
      %13 = vector.load %arg6[%c0_11, %c0_12] : memref<128x128xf32, #tpu.memory_space<vmem>>, vector<128x128xf32>
      tpu.vector_store %arg6[%c0_11, %c0_12], %12 {strides = array<i32>} : memref<128x128xf32, #tpu.memory_space<vmem>>, vector<128x128xf32>,
    } else {
    }
    %c0 = arith.constant 0 : index
    %c0_1 = arith.constant 0 : index
    %3 = vector.load %arg6[%c0, %c0_1] : memref<128x128xf32, #tpu.memory_space<vmem>>, vector<128x128xf32>
    %c0_2 = arith.constant 0 : index
    %c0_3 = arith.constant 0 : index
    %4 = vector.load %arg2[%c0_2, %c0_3] : memref<128x256xbf16, #tpu.memory_space<vmem>>, vector<128x256xbf16>
    %c0_4 = arith.constant 0 : index
    %c0_5 = arith.constant 0 : index
    %5 = vector.load %arg3[%c0_4, %c0_5] : memref<256x128xbf16, #tpu.memory_space<vmem>>, vector<256x128xbf16>
    %cst = arith.constant dense<0.000000e+00> : vector<128x128xf32>
    %6 = tpu.matmul %4, %5, %cst {dimension_numbers = #tpu.dot_dimension_numbers<[1], [0], [0], [1], [0, 0, 1, 1], [], []>} : vector<128x256xbf16>, vector<256x128xbf16>, vector<128x128xf32> -> vector<128x128xf32>
    %7 = arith.addf %3, %6 : vector<128x128xf32>
    %c0_6 = arith.constant 0 : index
    %c0_7 = arith.constant 0 : index
    %8 = vector.load %arg6[%c0_6, %c0_7] : memref<128x128xf32, #tpu.memory_space<vmem>>, vector<128x128xf32>
    tpu.vector_store %arg6[%c0_6, %c0_7], %7 {strides = array<i32>} : memref<128x128xf32, #tpu.memory_space<vmem>>, vector<128x128xf32>,
    %c0_i32_8 = arith.constant 0 : i32
    %9 = arith.cmpi eq, %arg1, %c0_i32_8 : i32
    %10 = arith.extui %9 : i1 to i32
    %c0_i32_9 = arith.constant 0 : i32
    %11 = arith.cmpi ne, %10, %c0_i32_9 : i32
    scf.if %11 {
      %c0_10 = arith.constant 0 : index
      %c0_11 = arith.constant 0 : index
      %12 = vector.load %arg6[%c0_10, %c0_11] : memref<128x128xf32, #tpu.memory_space<vmem>>, vector<128x128xf32>
      %c0_12 = arith.constant 0 : index
      %c0_13 = arith.constant 0 : index
      %13 = vector.load %arg4[%c0_12, %c0_13] : memref<1x128xf32, #tpu.memory_space<vmem>>, vector<1x128xf32>
      %14 = vector.broadcast %13 : vector<1x128xf32> to vector<128x128xf32>
      %15 = arith.addf %12, %14 : vector<128x128xf32>
      %c0_14 = arith.constant 0 : index
      %c0_15 = arith.constant 0 : index
      %16 = vector.load %arg5[%c0_14, %c0_15] : memref<128x128xf32, #tpu.memory_space<vmem>>, vector<128x128xf32>
      tpu.vector_store %arg5[%c0_14, %c0_15], %15 {strides = array<i32>} : memref<128x128xf32, #tpu.memory_space<vmem>>, vector<128x128xf32>,
    } else {
    }
    return
  }
  func.func @transform_0(%arg0: i32, %arg1: i32) -> (i32, i32) {
    %c0_i32 = arith.constant 0 : i32
    return %arg0, %arg1 : i32, i32
  }
  func.func @transform_1(%arg0: i32, %arg1: i32) -> (i32, i32) {
    %c0_i32 = arith.constant 0 : i32
    %c0_i32_0 = arith.constant 0 : i32
    return %arg1, %c0_i32 : i32, i32
  }
  func.func @transform_2(%arg0: i32, %arg1: i32) -> (i32, i32) {
    %c0_i32 = arith.constant 0 : i32
    %c0_i32_0 = arith.constant 0 : i32
    %c0_i32_1 = arith.constant 0 : i32
    return %c0_i32, %c0_i32_0 : i32, i32
  }
  func.func @transform_3(%arg0: i32, %arg1: i32) -> (i32, i32) {
    %c0_i32 = arith.constant 0 : i32
    %c0_i32_0 = arith.constant 0 : i32
    return %arg0, %c0_i32 : i32, i32
  }
}

</mosaic_0001>

<llo_original>
// kernel: sgc_forward.3
$region0: #{sgc_forward.3}
  #allocation0 [shape = 'u32[]', space=smem, size = 0x4, offset = 0x4, fixed_abs, tag = 'smem constant byte address 0x4 - core index']
  #allocation1 [shape = 'u32[72,128]{1,0:T(1,128)}', space=vmem, size = 0x9000, scoped, tag = 'internal scratch']
  %s0 = inlined_call_operand.vmem [shape: bf16[256,256], index: 0, kind: input, shape index: {}]
  %s1 = inlined_call_operand.vmem [shape: bf16[256,128], index: 1, kind: input, shape index: {}]
  %s2 = inlined_call_operand.vmem [shape: bf16[256,128], index: 2, kind: output, shape index: {}]
  %s3 = sld [smem:[#allocation0]]
  $region41: #{sgc_forward.3} parent=0
    _
  %s5 = ssub.s32 1, %s3
  %s6 = scalar_select 0, %s5, %s3
  loop: start=0, step=1, limit=4
  $region2: #{sgc_forward.3} parent=0 // loop_pre_header
    _
  $region3: #{sgc_forward.3} parent=0 // loop_header
    %s8 = sphi 0, %s12
    %p9 = scmp.ge.s32.totalorder %s8, 4
    %s18 = sphi 0, %s20
    %s21 = sphi 0, %s18
    %s22 = sphi 0, %s21
    %s38 = sphi 0, %s22
    %s42 = sphi 0, %s42
    %s44 = sphi 0, %s42
    %s45 = sphi 0, %s44
    %s59 = sphi 0, %s45
    %s65 = sphi 0, %s67
    %s68 = sphi 0, %s65
    %s69 = sphi 0, %s68
    %s85 = sphi 0, %s69
  $region4: #{sgc_forward.3} parent=0 // loop_header_branch
    %11 = sbr.rel (%p9) target = $region8
  $region5: #{sgc_forward.3} parent=0 // loop_body
    %s13 = ssub.s32 %s8, 1
    %s14 = ssub.s32 %s8, 2
    %s15 = sadd.s32 %s8, 1
    %s16 = ssub.s32 %s8, %s15
    %p17 = scmp.eq.s32.totalorder %s16, 0
    %s19 = sadd.s32 %s18, 1
    %s20 = scalar_select %p17, %s18, %s19
    %p23 = pneg %p17
    %p24 = scmp.eq.s32.totalorder %s8, 1
    %p25 = por %p23, %p24
    %p26 = scmp.ne.s32.totalorder %s18, %s21
    %p27 = scmp.eq.s32.totalorder %s8, 0
    %p28 = por %p26, %p27
    %p29 = scmp.ne.s32.totalorder %s18, %s21
    %p30 = scmp.eq.s32.totalorder %s13, 1
    %p31 = por %p29, %p30
    %p32 = scmp.ne.s32.totalorder %s21, %s22
    %p33 = scmp.eq.s32.totalorder %s13, 0
    %p34 = por %p32, %p33
    %p35 = scmp.ne.s32.totalorder %s21, %s22
    %p36 = scmp.eq.s32.totalorder %s14, 1
    %p37 = por %p35, %p36
    %p39 = scmp.ne.s32.totalorder %s22, %s38
    %p40 = scmp.eq.s32.totalorder %s14, 0
    %p41 = por %p39, %p40
    %s43 = sadd.s32 %s42, 1
    %p46 = scmp.eq.s32.totalorder %s8, 1
    %p47 = scmp.ne.s32.totalorder %s42, %s44
    %p48 = scmp.eq.s32.totalorder %s8, 0
    %p49 = por %p47, %p48
    %p50 = scmp.ne.s32.totalorder %s42, %s44
    %p51 = scmp.eq.s32.totalorder %s13, 1
    %p52 = por %p50, %p51
    %p53 = scmp.ne.s32.totalorder %s44, %s45
    %p54 = scmp.eq.s32.totalorder %s13, 0
    %p55 = por %p53, %p54
    %p56 = scmp.ne.s32.totalorder %s44, %s45
    %p57 = scmp.eq.s32.totalorder %s14, 1
    %p58 = por %p56, %p57
    %p60 = scmp.ne.s32.totalorder %s45, %s59
    %p61 = scmp.eq.s32.totalorder %s14, 0
    %p62 = por %p60, %p61
    %s63 = ssub.s32 %s8, %s15
    %p64 = scmp.eq.s32.totalorder %s63, 0
    %s66 = sadd.s32 %s65, 1
    %s67 = scalar_select %p64, %s65, %s66
    %p70 = pneg %p64
    %p71 = scmp.eq.s32.totalorder %s8, 1
    %p72 = por %p70, %p71
    %p73 = scmp.ne.s32.totalorder %s65, %s68
    %p74 = scmp.eq.s32.totalorder %s8, 0
    %p75 = por %p73, %p74
    %p76 = scmp.ne.s32.totalorder %s65, %s68
    %p77 = scmp.eq.s32.totalorder %s13, 1
    %p78 = por %p76, %p77
    %p79 = scmp.ne.s32.totalorder %s68, %s69
    %p80 = scmp.eq.s32.totalorder %s13, 0
    %p81 = por %p79, %p80
    %p82 = scmp.ne.s32.totalorder %s68, %s69
    %p83 = scmp.eq.s32.totalorder %s14, 1
    %p84 = por %p82, %p83
    %p86 = scmp.ne.s32.totalorder %s69, %s85
    %p87 = scmp.eq.s32.totalorder %s14, 0
    %p88 = por %p86, %p87
    %p89 = scmp.le.s32.totalorder 1, %s8
    %p90 = scmp.lt.s32.totalorder %s8, 3
    %p91 = pnand %p89, %p90
    %p92 = pneg %p91
    // Predicated region
    $region9: #{sgc_forward.3} parent=5 // pred_check
      _
    $region10: #{sgc_forward.3} parent=5 // pred_check_branch
      %94 = sbr.rel (%p91) target = $region12
    $region11: #{sgc_forward.3} parent=5 // pred_region
      %s95 = ssub.s32 %s8, 1
      // Predicated region
      $region13: #{sgc_forward.3} parent=11 // pred_check
        %p96 = pneg %p55
      $region14: #{sgc_forward.3} parent=11 // pred_check_branch
        %98 = sbr.rel (%p96) target = $region16
      $region15: #{sgc_forward.3} parent=11 // pred_region
        _
      $region16: #{sgc_forward.3} parent=11 // pred_fallthru
        _
    $region12: #{sgc_forward.3} parent=5 // pred_fallthru
      _
    %p99 = scmp.lt.s32.totalorder %s8, 2
    // Predicated region
    $region17: #{sgc_forward.3} parent=5 // pred_check
      %p100 = pneg %p99
    $region18: #{sgc_forward.3} parent=5 // pred_check_branch
      %102 = sbr.rel (%p100) target = $region20
    $region19: #{sgc_forward.3} parent=5 // pred_region
      // Predicated region
      $region21: #{sgc_forward.3} parent=19 // pred_check
        %p103 = pneg %p28
      $region22: #{sgc_forward.3} parent=19 // pred_check_branch
        %105 = sbr.rel (%p103) target = $region24
      $region23: #{sgc_forward.3} parent=19 // pred_region
        %s106 = smul.u32 16, %s8
        %p107 = scmp.lt.s32.totalorder %s106, 31
        %s108 = scalar_select %p107, %s106, 31
        %s109 = smul.addr %s108, 2
        %s110 = smul.addr %s109, 4
        %s111 = scalar_lea.vmem %s0, %s110
        %s112 = smul.u32 16, %s8
      $region24: #{sgc_forward.3} parent=19 // pred_fallthru
        _
    $region20: #{sgc_forward.3} parent=5 // pred_fallthru
      _
    %p113 = scmp.le.s32.totalorder 1, %s8
    %p114 = scmp.lt.s32.totalorder %s8, 3
    %p115 = pnand %p113, %p114
    %p116 = pneg %p115
    // Predicated region
    $region25: #{sgc_forward.3} parent=5 // pred_check
      _
    $region26: #{sgc_forward.3} parent=5 // pred_check_branch
      %118 = sbr.rel (%p115) target = $region28
    $region27: #{sgc_forward.3} parent=5 // pred_region
      %s119 = ssub.s32 %s8, 1
      %s120 = smul.u32 16, %s13
      %p121 = scmp.lt.s32.totalorder %s120, 31
      %s122 = scalar_select %p121, %s120, 31
      %s123 = smul.addr %s122, 2
      %s124 = smul.addr %s123, 4
      %s125 = scalar_lea.vmem %s0, %s124
      %p126 = pneg %p34
      %p127 = pneg %p31
      %p128 = pneg %p55
      %p129 = pneg %p52
      %p130 = pneg %p81
      %p131 = pneg %p78
      %s132 = smul.u32 16, %s13
      %p133 = scmp.lt.s32.totalorder %s132, 31
      %s134 = scalar_select %p133, %s132, 31
      %s135 = smul.addr %s134, 4
      %s136 = scalar_lea.vmem %s2, %s135
      %s137 = smul.u32 16, %s13
      %p138 = scmp.lt.s32.totalorder %s137, 31
      %s139 = scalar_select %p138, %s137, 31
      %s140 = smul.addr %s139, 2
      %s141 = smul.addr %s140, 4
      %s142 = scalar_lea.vmem %s0, %s141
      %s143 = smul.u32 16, %s13
      %s144 = smul.u32 16, %s13
      %p145 = scmp.lt.s32.totalorder %s144, 31
      %s146 = scalar_select %p145, %s144, 31
      %s147 = smul.addr %s146, 4
      %s148 = scalar_lea.vmem %s2, %s147
      %s149 = smul.u32 16, %s13
      %v150 = vld [vmem:[%s142] sm:$0xff]
      %v151 = vld [vmem:[%s142 + $0x8] sm:$0xff]
      %v152 = vld [vmem:[%s142 + $0x10] sm:$0xff]
      %v153 = vld [vmem:[%s142 + $0x18] sm:$0xff]
      %v154 = vld [vmem:[%s142 + $0x20] sm:$0xff]
      %v155 = vld [vmem:[%s142 + $0x28] sm:$0xff]
      %v156 = vld [vmem:[%s142 + $0x30] sm:$0xff]
      %v157 = vld [vmem:[%s142 + $0x38] sm:$0xff]
      %v158 = vld [vmem:[%s142 + $0x40] sm:$0xff]
      %v159 = vld [vmem:[%s142 + $0x48] sm:$0xff]
      %v160 = vld [vmem:[%s142 + $0x50] sm:$0xff]
      %v161 = vld [vmem:[%s142 + $0x58] sm:$0xff]
      %v162 = vld [vmem:[%s142 + $0x60] sm:$0xff]
      %v163 = vld [vmem:[%s142 + $0x68] sm:$0xff]
      %v164 = vld [vmem:[%s142 + $0x70] sm:$0xff]
      %v165 = vld [vmem:[%s142 + $0x78] sm:$0xff]
      %v166 = vld [vmem:[%s1] sm:$0xf]
      %v167 = vld [vmem:[%s1 + $0x4] sm:$0xf]
      %v168 = vld [vmem:[%s1 + $0x8] sm:$0xf]
      %v169 = vld [vmem:[%s1 + $0xc] sm:$0xf]
      %v170 = vld [vmem:[%s1 + $0x10] sm:$0xf]
      %v171 = vld [vmem:[%s1 + $0x14] sm:$0xf]
      %v172 = vld [vmem:[%s1 + $0x18] sm:$0xf]
      %v173 = vld [vmem:[%s1 + $0x1c] sm:$0xf]
      %v174 = vld [vmem:[%s1 + $0x20] sm:$0xf]
      %v175 = vld [vmem:[%s1 + $0x24] sm:$0xf]
      %v176 = vld [vmem:[%s1 + $0x28] sm:$0xf]
      %v177 = vld [vmem:[%s1 + $0x2c] sm:$0xf]
      %v178 = vld [vmem:[%s1 + $0x30] sm:$0xf]
      %v179 = vld [vmem:[%s1 + $0x34] sm:$0xf]
      %v180 = vld [vmem:[%s1 + $0x38] sm:$0xf]
      %v181 = vld [vmem:[%s1 + $0x3c] sm:$0xf]
      %v182 = vld [vmem:[%s1 + $0x40] sm:$0xf]
      %v183 = vld [vmem:[%s1 + $0x44] sm:$0xf]
      %v184 = vld [vmem:[%s1 + $0x48] sm:$0xf]
      %v185 = vld [vmem:[%s1 + $0x4c] sm:$0xf]
      %v186 = vld [vmem:[%s1 + $0x50] sm:$0xf]
      %v187 = vld [vmem:[%s1 + $0x54] sm:$0xf]
      %v188 = vld [vmem:[%s1 + $0x58] sm:$0xf]
      %v189 = vld [vmem:[%s1 + $0x5c] sm:$0xf]
      %v190 = vld [vmem:[%s1 + $0x60] sm:$0xf]
      %v191 = vld [vmem:[%s1 + $0x64] sm:$0xf]
      %v192 = vld [vmem:[%s1 + $0x68] sm:$0xf]
      %v193 = vld [vmem:[%s1 + $0x6c] sm:$0xf]
      %v194 = vld [vmem:[%s1 + $0x70] sm:$0xf]
      %v195 = vld [vmem:[%s1 + $0x74] sm:$0xf]
      %v196 = vld [vmem:[%s1 + $0x78] sm:$0xf]
      %v197 = vld [vmem:[%s1 + $0x7c] sm:$0xf]
      %v214 = vunpack.c.l.b16 %v150
      %v215 = vunpack.c.h.b16 %v150
      %v216 = vunpack.c.l.b16 %v151
      %v217 = vunpack.c.h.b16 %v151
      %v218 = vunpack.c.l.b16 %v152
      %v219 = vunpack.c.h.b16 %v152
      %v220 = vunpack.c.l.b16 %v153
      %v221 = vunpack.c.h.b16 %v153
      %v222 = vunpack.c.l.b16 %v154
      %v223 = vunpack.c.h.b16 %v154
      %v224 = vunpack.c.l.b16 %v155
      %v225 = vunpack.c.h.b16 %v155
      %v226 = vunpack.c.l.b16 %v156
      %v227 = vunpack.c.h.b16 %v156
      %v228 = vunpack.c.l.b16 %v157
      %v229 = vunpack.c.h.b16 %v157
      %v230 = vunpack.c.l.b16 %v158
      %v231 = vunpack.c.h.b16 %v158
      %v232 = vunpack.c.l.b16 %v159
      %v233 = vunpack.c.h.b16 %v159
      %v234 = vunpack.c.l.b16 %v160
      %v235 = vunpack.c.h.b16 %v160
      %v236 = vunpack.c.l.b16 %v161
      %v237 = vunpack.c.h.b16 %v161
      %v238 = vunpack.c.l.b16 %v162
      %v239 = vunpack.c.h.b16 %v162
      %v240 = vunpack.c.l.b16 %v163
      %v241 = vunpack.c.h.b16 %v163
      %v242 = vunpack.c.l.b16 %v164
      %v243 = vunpack.c.h.b16 %v164
      %v244 = vunpack.c.l.b16 %v165
      %v245 = vunpack.c.h.b16 %v165
      %v246 = vpack.c.b16 %v216, %v214
      %v247 = vpack.c.b16 %v217, %v215
      %v248 = vpack.c.b16 %v220, %v218
      %v249 = vpack.c.b16 %v221, %v219
      %v250 = vpack.c.b16 %v224, %v222
      %v251 = vpack.c.b16 %v225, %v223
      %v252 = vpack.c.b16 %v228, %v226
      %v253 = vpack.c.b16 %v229, %v227
      %v254 = vpack.c.b16 %v232, %v230
      %v255 = vpack.c.b16 %v233, %v231
      %v256 = vpack.c.b16 %v236, %v234
      %v257 = vpack.c.b16 %v237, %v235
      %v258 = vpack.c.b16 %v240, %v238
      %v259 = vpack.c.b16 %v241, %v239
      %v260 = vpack.c.b16 %v244, %v242
      %v261 = vpack.c.b16 %v245, %v243
      %v310 = vunpack.c.l.b16 %v166
      %v311 = vunpack.c.l.b16 %v167
      %v312 = vunpack.c.l.b16 %v168
      %v313 = vunpack.c.l.b16 %v169
      %v314 = vunpack.c.l.b16 %v170
      %v315 = vunpack.c.l.b16 %v171
      %v316 = vunpack.c.l.b16 %v172
      %v317 = vunpack.c.l.b16 %v173
      %v318 = vunpack.c.l.b16 %v174
      %v319 = vunpack.c.l.b16 %v175
      %v320 = vunpack.c.l.b16 %v176
      %v321 = vunpack.c.l.b16 %v177
      %v322 = vunpack.c.l.b16 %v178
      %v323 = vunpack.c.l.b16 %v179
      %v324 = vunpack.c.l.b16 %v180
      %v325 = vunpack.c.l.b16 %v181
      %v326 = vunpack.c.l.b16 %v182
      %v327 = vunpack.c.l.b16 %v183
      %v328 = vunpack.c.l.b16 %v184
      %v329 = vunpack.c.l.b16 %v185
      %v330 = vunpack.c.l.b16 %v186
      %v331 = vunpack.c.l.b16 %v187
      %v332 = vunpack.c.l.b16 %v188
      %v333 = vunpack.c.l.b16 %v189
      %v334 = vunpack.c.l.b16 %v190
      %v335 = vunpack.c.l.b16 %v191
      %v336 = vunpack.c.l.b16 %v192
      %v337 = vunpack.c.l.b16 %v193
      %v338 = vunpack.c.l.b16 %v194
      %v339 = vunpack.c.l.b16 %v195
      %v340 = vunpack.c.l.b16 %v196
      %v341 = vunpack.c.l.b16 %v197
      %v342 = vpack.c.b16 %v311, %v310
      %v343 = vpack.c.b16 %v313, %v312
      %v344 = vpack.c.b16 %v315, %v314
      %v345 = vpack.c.b16 %v317, %v316
      %v346 = vpack.c.b16 %v319, %v318
      %v347 = vpack.c.b16 %v321, %v320
      %v348 = vpack.c.b16 %v323, %v322
      %v349 = vpack.c.b16 %v325, %v324
      %v350 = vpack.c.b16 %v327, %v326
      %v351 = vpack.c.b16 %v329, %v328
      %v352 = vpack.c.b16 %v331, %v330
      %v353 = vpack.c.b16 %v333, %v332
      %v354 = vpack.c.b16 %v335, %v334
      %v355 = vpack.c.b16 %v337, %v336
      %v356 = vpack.c.b16 %v339, %v338
      %v357 = vpack.c.b16 %v341, %v340
      %374 = vmatpush.bf16.msra.mxu0 %v349
      %375 = vmatpush.bf16.msra.mxu0 %v348
      %376 = vmatpush.bf16.msra.mxu0 %v347
      %377 = vmatpush.bf16.msra.mxu0 %v346
      %378 = vmatpush.bf16.msra.mxu0 %v345
      %379 = vmatpush.bf16.msra.mxu0 %v344
      %380 = vmatpush.bf16.msra.mxu0 %v343
      %381 = vmatpush.bf16.msra.mxu0 %v342
      %382 = vmatmul.bf16.gmra.mxu0 %v246
      %v383 = vpop.f32.mrf.mxu0
      %v384 = vadd.f32 0.0, %v383
      %v385 = vpop.f32.mrf.mxu0
      %v386 = vadd.f32 0.0, %v385
      %387 = vmatmul.bf16.gmra.mxu0 %v248
      %v388 = vpop.f32.mrf.mxu0
      %v389 = vadd.f32 0.0, %v388
      %v390 = vpop.f32.mrf.mxu0
      %v391 = vadd.f32 0.0, %v390
      %392 = vmatmul.bf16.gmra.mxu0 %v250
      %v393 = vpop.f32.mrf.mxu0
      %v394 = vadd.f32 0.0, %v393
      %v395 = vpop.f32.mrf.mxu0
      %v396 = vadd.f32 0.0, %v395
      %397 = vmatmul.bf16.gmra.mxu0 %v252
      %v398 = vpop.f32.mrf.mxu0
      %v399 = vadd.f32 0.0, %v398
      %v400 = vpop.f32.mrf.mxu0
      %v401 = vadd.f32 0.0, %v400
      %402 = vmatmul.bf16.gmra.mxu0 %v254
      %v403 = vpop.f32.mrf.mxu0
      %v404 = vadd.f32 0.0, %v403
      %v405 = vpop.f32.mrf.mxu0
      %v406 = vadd.f32 0.0, %v405
      %407 = vmatmul.bf16.gmra.mxu0 %v256
      %v408 = vpop.f32.mrf.mxu0
      %v409 = vadd.f32 0.0, %v408
      %v410 = vpop.f32.mrf.mxu0
      %v411 = vadd.f32 0.0, %v410
      %412 = vmatmul.bf16.gmra.mxu0 %v258
      %v413 = vpop.f32.mrf.mxu0
      %v414 = vadd.f32 0.0, %v413
      %v415 = vpop.f32.mrf.mxu0
      %v416 = vadd.f32 0.0, %v415
      %417 = vmatmul.bf16.gmra.mxu0 %v260
      %v418 = vpop.f32.mrf.mxu0
      %v419 = vadd.f32 0.0, %v418
      %v420 = vpop.f32.mrf.mxu0
      %v421 = vadd.f32 0.0, %v420
      %422 = vdwg.mxu0
      %423 = vmatpush.bf16.msra.mxu0 %v357
      %424 = vmatpush.bf16.msra.mxu0 %v356
      %425 = vmatpush.bf16.msra.mxu0 %v355
      %426 = vmatpush.bf16.msra.mxu0 %v354
      %427 = vmatpush.bf16.msra.mxu0 %v353
      %428 = vmatpush.bf16.msra.mxu0 %v352
      %429 = vmatpush.bf16.msra.mxu0 %v351
      %430 = vmatpush.bf16.msra.mxu0 %v350
      %431 = vmatmul.bf16.gmra.mxu0 %v247
      %v432 = vpop.f32.mrf.mxu0
      %v433 = vadd.f32 %v384, %v432
      %v434 = vpop.f32.mrf.mxu0
      %v435 = vadd.f32 %v386, %v434
      %436 = vmatmul.bf16.gmra.mxu0 %v249
      %v437 = vpop.f32.mrf.mxu0
      %v438 = vadd.f32 %v389, %v437
      %v439 = vpop.f32.mrf.mxu0
      %v440 = vadd.f32 %v391, %v439
      %441 = vmatmul.bf16.gmra.mxu0 %v251
      %v442 = vpop.f32.mrf.mxu0
      %v443 = vadd.f32 %v394, %v442
      %v444 = vpop.f32.mrf.mxu0
      %v445 = vadd.f32 %v396, %v444
      %446 = vmatmul.bf16.gmra.mxu0 %v253
      %v447 = vpop.f32.mrf.mxu0
      %v448 = vadd.f32 %v399, %v447
      %v449 = vpop.f32.mrf.mxu0
      %v450 = vadd.f32 %v401, %v449
      %451 = vmatmul.bf16.gmra.mxu0 %v255
      %v452 = vpop.f32.mrf.mxu0
      %v453 = vadd.f32 %v404, %v452
      %v454 = vpop.f32.mrf.mxu0
      %v455 = vadd.f32 %v406, %v454
      %456 = vmatmul.bf16.gmra.mxu0 %v257
      %v457 = vpop.f32.mrf.mxu0
      %v458 = vadd.f32 %v409, %v457
      %v459 = vpop.f32.mrf.mxu0
      %v460 = vadd.f32 %v411, %v459
      %461 = vmatmul.bf16.gmra.mxu0 %v259
      %v462 = vpop.f32.mrf.mxu0
      %v463 = vadd.f32 %v414, %v462
      %v464 = vpop.f32.mrf.mxu0
      %v465 = vadd.f32 %v416, %v464
      %466 = vmatmul.bf16.gmra.mxu0 %v261
      %v467 = vpop.f32.mrf.mxu0
      %v468 = vadd.f32 %v419, %v467
      %v469 = vpop.f32.mrf.mxu0
      %v470 = vadd.f32 %v421, %v469
      %471 = vdwg.mxu0
      %v472 = vpack.c.bf16 %v433, %v433
      %v473 = vpack.c.bf16 %v435, %v435
      %v474 = vpack.c.bf16 %v438, %v438
      %v475 = vpack.c.bf16 %v440, %v440
      %v476 = vpack.c.bf16 %v443, %v443
      %v477 = vpack.c.bf16 %v445, %v445
      %v478 = vpack.c.bf16 %v448, %v448
      %v479 = vpack.c.bf16 %v450, %v450
      %v480 = vpack.c.bf16 %v453, %v453
      %v481 = vpack.c.bf16 %v455, %v455
      %v482 = vpack.c.bf16 %v458, %v458
      %v483 = vpack.c.bf16 %v460, %v460
      %v484 = vpack.c.bf16 %v463, %v463
      %v485 = vpack.c.bf16 %v465, %v465
      %v486 = vpack.c.bf16 %v468, %v468
      %v487 = vpack.c.bf16 %v470, %v470
      %488 = vst [vmem:[%s148] sm:$0xf] %v472
      %489 = vst [vmem:[%s148 + $0x4] sm:$0xf] %v473
      %490 = vst [vmem:[%s148 + $0x8] sm:$0xf] %v474
      %491 = vst [vmem:[%s148 + $0xc] sm:$0xf] %v475
      %492 = vst [vmem:[%s148 + $0x10] sm:$0xf] %v476
      %493 = vst [vmem:[%s148 + $0x14] sm:$0xf] %v477
      %494 = vst [vmem:[%s148 + $0x18] sm:$0xf] %v478
      %495 = vst [vmem:[%s148 + $0x1c] sm:$0xf] %v479
      %496 = vst [vmem:[%s148 + $0x20] sm:$0xf] %v480
      %497 = vst [vmem:[%s148 + $0x24] sm:$0xf] %v481
      %498 = vst [vmem:[%s148 + $0x28] sm:$0xf] %v482
      %499 = vst [vmem:[%s148 + $0x2c] sm:$0xf] %v483
      %500 = vst [vmem:[%s148 + $0x30] sm:$0xf] %v484
      %501 = vst [vmem:[%s148 + $0x34] sm:$0xf] %v485
      %502 = vst [vmem:[%s148 + $0x38] sm:$0xf] %v486
      %503 = vst [vmem:[%s148 + $0x3c] sm:$0xf] %v487
      %s504 = smul.u32 16, %s13
      %p505 = scmp.lt.s32.totalorder %s504, 31
      %s506 = scalar_select %p505, %s504, 31
      %s507 = smul.addr %s506, 4
      %s508 = scalar_lea.vmem %s2, %s507
      // Predicated region
      $region29: #{sgc_forward.3} parent=27 // pred_check
        %p509 = pneg %p78
      $region30: #{sgc_forward.3} parent=27 // pred_check_branch
        %511 = sbr.rel (%p509) target = $region32
      $region31: #{sgc_forward.3} parent=27 // pred_region
        %s512 = smul.u32 16, %s13
      $region32: #{sgc_forward.3} parent=27 // pred_fallthru
        _
    $region28: #{sgc_forward.3} parent=5 // pred_fallthru
      _
    %p513 = scmp.le.s32.totalorder 2, %s8
    // Predicated region
    $region33: #{sgc_forward.3} parent=5 // pred_check
      %p514 = pneg %p513
    $region34: #{sgc_forward.3} parent=5 // pred_check_branch
      %516 = sbr.rel (%p514) target = $region36
    $region35: #{sgc_forward.3} parent=5 // pred_region
      %s517 = ssub.s32 %s8, 2
      // Predicated region
      $region37: #{sgc_forward.3} parent=35 // pred_check
        %p518 = pneg %p84
      $region38: #{sgc_forward.3} parent=35 // pred_check_branch
        %520 = sbr.rel (%p518) target = $region40
      $region39: #{sgc_forward.3} parent=35 // pred_region
        %s521 = smul.u32 16, %s14
        %p522 = scmp.lt.s32.totalorder %s521, 31
        %s523 = scalar_select %p522, %s521, 31
        %s524 = smul.addr %s523, 4
        %s525 = scalar_lea.vmem %s2, %s524
      $region40: #{sgc_forward.3} parent=35 // pred_fallthru
        _
    $region36: #{sgc_forward.3} parent=5 // pred_fallthru
      _
  $region6: #{sgc_forward.3} parent=0 // loop_footer
    %s12 = sadd.s32 1, %s8
  $region7: #{sgc_forward.3} parent=0 // loop_footer_branch
    %7 = sbr.rel target = $region3
  $region8: #{sgc_forward.3} parent=0 // loop_exit
    _

// kernel: sgc_forward.4
$region0: #{sgc_forward.4}
  #allocation0 [shape = 'u32[]', space=smem, size = 0x4, offset = 0x4, fixed_abs, tag = 'smem constant byte address 0x4 - core index']
  #allocation1 [shape = 'u32[72,128]{1,0:T(1,128)}', space=vmem, size = 0x9000, scoped, tag = 'internal scratch']
  #allocation2 [shape = 'f32[128,128]{1,0:T(8,128)}', space=vmem, size = 0x10000, scoped, tag = 'scratch operand']
  %s0 = inlined_call_operand.vmem [shape: bf16[256,256], index: 0, kind: input, shape index: {}]
  %s1 = inlined_call_operand.vmem [shape: bf16[256,128], index: 1, kind: input, shape index: {}]
  %s2 = inlined_call_operand.vmem [shape: f32[1,128], index: 2, kind: input, shape index: {}]
  %s3 = inlined_call_operand.vmem [shape: bf16[256,128], index: 3, kind: output, shape index: {}]
  %s4 = sld [smem:[#allocation0]]
  $region53: #{sgc_forward.4} parent=0
    _
  %s6 = ssub.s32 1, %s4
  %s7 = scalar_select 0, %s6, %s4
  loop: start=0, step=1, limit=4
  $region2: #{sgc_forward.4} parent=0 // loop_pre_header
    _
  $region3: #{sgc_forward.4} parent=0 // loop_header
    %s9 = sphi 0, %s13
    %p10 = scmp.ge.s32.totalorder %s9, 4
    %s16 = sphi 0, %s28
    %s17 = sphi 0, %s24
    %s18 = sphi 0, %s16
    %s19 = sphi 0, %s17
    %s20 = sphi 0, %s18
    %s21 = sphi 0, %s19
    %s33 = sphi 0, %s35
    %s36 = sphi 0, %s33
    %s37 = sphi 0, %s36
    %s53 = sphi 0, %s37
    %s59 = sphi 0, %s61
    %s62 = sphi 0, %s59
    %s63 = sphi 0, %s62
    %s79 = sphi 0, %s63
    %s83 = sphi 0, %s83
    %s85 = sphi 0, %s83
    %s86 = sphi 0, %s85
    %s100 = sphi 0, %s86
    %s106 = sphi 0, %s108
    %s109 = sphi 0, %s106
    %s110 = sphi 0, %s109
    %s126 = sphi 0, %s110
  $region4: #{sgc_forward.4} parent=0 // loop_header_branch
    %12 = sbr.rel (%p10) target = $region8
  $region5: #{sgc_forward.4} parent=0 // loop_body
    %s14 = ssub.s32 %s9, 1
    %s15 = ssub.s32 %s9, 2
    %s22 = sadd.s32 1, %s17
    %p23 = scmp.ge.s32.totalorder %s22, 1
    %s24 = scalar_select %p23, 0, %s22
    %s25 = sadd.s32 1, %s16
    %s26 = scalar_select %p23, %s25, %s16
    %p27 = scmp.ge.s32.totalorder %s26, 2
    %s28 = scalar_select %p27, 0, %s26
    %s29 = ssub.s32 %s16, %s28
    %s30 = ssub.s32 %s17, %s24
    %s31 = sor.u32 %s29, %s30
    %p32 = scmp.eq.s32.totalorder %s31, 0
    %s34 = sadd.s32 %s33, 1
    %s35 = scalar_select %p32, %s33, %s34
    %p38 = pneg %p32
    %p39 = scmp.eq.s32.totalorder %s9, 1
    %p40 = por %p38, %p39
    %p41 = scmp.ne.s32.totalorder %s33, %s36
    %p42 = scmp.eq.s32.totalorder %s9, 0
    %p43 = por %p41, %p42
    %p44 = scmp.ne.s32.totalorder %s33, %s36
    %p45 = scmp.eq.s32.totalorder %s14, 1
    %p46 = por %p44, %p45
    %p47 = scmp.ne.s32.totalorder %s36, %s37
    %p48 = scmp.eq.s32.totalorder %s14, 0
    %p49 = por %p47, %p48
    %p50 = scmp.ne.s32.totalorder %s36, %s37
    %p51 = scmp.eq.s32.totalorder %s15, 1
    %p52 = por %p50, %p51
    %p54 = scmp.ne.s32.totalorder %s37, %s53
    %p55 = scmp.eq.s32.totalorder %s15, 0
    %p56 = por %p54, %p55
    %s57 = ssub.s32 %s17, %s24
    %p58 = scmp.eq.s32.totalorder %s57, 0
    %s60 = sadd.s32 %s59, 1
    %s61 = scalar_select %p58, %s59, %s60
    %p64 = pneg %p58
    %p65 = scmp.eq.s32.totalorder %s9, 1
    %p66 = por %p64, %p65
    %p67 = scmp.ne.s32.totalorder %s59, %s62
    %p68 = scmp.eq.s32.totalorder %s9, 0
    %p69 = por %p67, %p68
    %p70 = scmp.ne.s32.totalorder %s59, %s62
    %p71 = scmp.eq.s32.totalorder %s14, 1
    %p72 = por %p70, %p71
    %p73 = scmp.ne.s32.totalorder %s62, %s63
    %p74 = scmp.eq.s32.totalorder %s14, 0
    %p75 = por %p73, %p74
    %p76 = scmp.ne.s32.totalorder %s62, %s63
    %p77 = scmp.eq.s32.totalorder %s15, 1
    %p78 = por %p76, %p77
    %p80 = scmp.ne.s32.totalorder %s63, %s79
    %p81 = scmp.eq.s32.totalorder %s15, 0
    %p82 = por %p80, %p81
    %s84 = sadd.s32 %s83, 1
    %p87 = scmp.eq.s32.totalorder %s9, 1
    %p88 = scmp.ne.s32.totalorder %s83, %s85
    %p89 = scmp.eq.s32.totalorder %s9, 0
    %p90 = por %p88, %p89
    %p91 = scmp.ne.s32.totalorder %s83, %s85
    %p92 = scmp.eq.s32.totalorder %s14, 1
    %p93 = por %p91, %p92
    %p94 = scmp.ne.s32.totalorder %s85, %s86
    %p95 = scmp.eq.s32.totalorder %s14, 0
    %p96 = por %p94, %p95
    %p97 = scmp.ne.s32.totalorder %s85, %s86
    %p98 = scmp.eq.s32.totalorder %s15, 1
    %p99 = por %p97, %p98
    %p101 = scmp.ne.s32.totalorder %s86, %s100
    %p102 = scmp.eq.s32.totalorder %s15, 0
    %p103 = por %p101, %p102
    %s104 = ssub.s32 %s16, %s28
    %p105 = scmp.eq.s32.totalorder %s104, 0
    %s107 = sadd.s32 %s106, 1
    %s108 = scalar_select %p105, %s106, %s107
    %p111 = pneg %p105
    %p112 = scmp.eq.s32.totalorder %s9, 1
    %p113 = por %p111, %p112
    %p114 = scmp.ne.s32.totalorder %s106, %s109
    %p115 = scmp.eq.s32.totalorder %s9, 0
    %p116 = por %p114, %p115
    %p117 = scmp.ne.s32.totalorder %s106, %s109
    %p118 = scmp.eq.s32.totalorder %s14, 1
    %p119 = por %p117, %p118
    %p120 = scmp.ne.s32.totalorder %s109, %s110
    %p121 = scmp.eq.s32.totalorder %s14, 0
    %p122 = por %p120, %p121
    %p123 = scmp.ne.s32.totalorder %s109, %s110
    %p124 = scmp.eq.s32.totalorder %s15, 1
    %p125 = por %p123, %p124
    %p127 = scmp.ne.s32.totalorder %s110, %s126
    %p128 = scmp.eq.s32.totalorder %s15, 0
    %p129 = por %p127, %p128
    %p130 = scmp.le.s32.totalorder 1, %s9
    %p131 = scmp.lt.s32.totalorder %s9, 3
    %p132 = pnand %p130, %p131
    %p133 = pneg %p132
    // Predicated region
    $region9: #{sgc_forward.4} parent=5 // pred_check
      _
    $region10: #{sgc_forward.4} parent=5 // pred_check_branch
      %135 = sbr.rel (%p132) target = $region12
    $region11: #{sgc_forward.4} parent=5 // pred_region
      %s136 = ssub.s32 %s9, 1
      // Predicated region
      $region13: #{sgc_forward.4} parent=11 // pred_check
        %p137 = pneg %p75
      $region14: #{sgc_forward.4} parent=11 // pred_check_branch
        %139 = sbr.rel (%p137) target = $region16
      $region15: #{sgc_forward.4} parent=11 // pred_region
        %s140 = smul.u32 32, %s19
        %p141 = scmp.lt.s32.totalorder %s140, 31
        %s142 = scalar_select %p141, %s140, 31
        %s143 = smul.addr %s142, 4
        %s144 = scalar_lea.vmem %s1, %s143
        %s145 = smul.u32 32, %s19
      $region16: #{sgc_forward.4} parent=11 // pred_fallthru
        _
      // Predicated region
      $region17: #{sgc_forward.4} parent=11 // pred_check
        %p146 = pneg %p96
      $region18: #{sgc_forward.4} parent=11 // pred_check_branch
        %148 = sbr.rel (%p146) target = $region20
      $region19: #{sgc_forward.4} parent=11 // pred_region
        _
      $region20: #{sgc_forward.4} parent=11 // pred_fallthru
        _
    $region12: #{sgc_forward.4} parent=5 // pred_fallthru
      _
    %p149 = scmp.lt.s32.totalorder %s9, 2
    // Predicated region
    $region21: #{sgc_forward.4} parent=5 // pred_check
      %p150 = pneg %p149
    $region22: #{sgc_forward.4} parent=5 // pred_check_branch
      %152 = sbr.rel (%p150) target = $region24
    $region23: #{sgc_forward.4} parent=5 // pred_region
      // Predicated region
      $region25: #{sgc_forward.4} parent=23 // pred_check
        %p153 = pneg %p43
      $region26: #{sgc_forward.4} parent=23 // pred_check_branch
        %155 = sbr.rel (%p153) target = $region28
      $region27: #{sgc_forward.4} parent=23 // pred_region
        %s156 = smul.u32 16, %s16
        %s157 = smul.u32 2, %s17
        %p158 = scmp.lt.s32.totalorder %s156, 31
        %s159 = scalar_select %p158, %s156, 31
        %p160 = scmp.lt.s32.totalorder %s157, 1
        %s161 = scalar_select %p160, %s157, 1
        %s162 = smul.addr %s159, 2
        %s163 = sadd.s32 %s161, %s162
        %s164 = smul.addr %s163, 4
        %s165 = scalar_lea.vmem %s0, %s164
        %s166 = smul.u32 16, %s16
        %s167 = smul.u32 2, %s17
      $region28: #{sgc_forward.4} parent=23 // pred_fallthru
        _
    $region24: #{sgc_forward.4} parent=5 // pred_fallthru
      _
    %p168 = scmp.le.s32.totalorder 1, %s9
    %p169 = scmp.lt.s32.totalorder %s9, 3
    %p170 = pnand %p168, %p169
    %p171 = pneg %p170
    // Predicated region
    $region29: #{sgc_forward.4} parent=5 // pred_check
      _
    $region30: #{sgc_forward.4} parent=5 // pred_check_branch
      %173 = sbr.rel (%p170) target = $region32
    $region31: #{sgc_forward.4} parent=5 // pred_region
      %s174 = ssub.s32 %s9, 1
      %s175 = smul.u32 16, %s18
      %s176 = smul.u32 2, %s19
      %p177 = scmp.lt.s32.totalorder %s175, 31
      %s178 = scalar_select %p177, %s175, 31
      %p179 = scmp.lt.s32.totalorder %s176, 1
      %s180 = scalar_select %p179, %s176, 1
      %s181 = smul.addr %s178, 2
      %s182 = sadd.s32 %s180, %s181
      %s183 = smul.addr %s182, 4
      %s184 = scalar_lea.vmem %s0, %s183
      %p185 = pneg %p49
      %p186 = pneg %p46
      %s187 = smul.u32 32, %s19
      %p188 = scmp.lt.s32.totalorder %s187, 31
      %s189 = scalar_select %p188, %s187, 31
      %s190 = smul.addr %s189, 4
      %s191 = scalar_lea.vmem %s1, %s190
      %p192 = pneg %p75
      %p193 = pneg %p72
      %p194 = pneg %p96
      %p195 = pneg %p93
      %p196 = pneg %p122
      %p197 = pneg %p119
      %s198 = smul.u32 16, %s18
      %p199 = scmp.lt.s32.totalorder %s198, 31
      %s200 = scalar_select %p199, %s198, 31
      %s201 = smul.addr %s200, 4
      %s202 = scalar_lea.vmem %s3, %s201
      %s203 = smul.u32 16, %s18
      %s204 = smul.u32 2, %s19
      %p205 = scmp.lt.s32.totalorder %s203, 31
      %s206 = scalar_select %p205, %s203, 31
      %p207 = scmp.lt.s32.totalorder %s204, 1
      %s208 = scalar_select %p207, %s204, 1
      %s209 = smul.addr %s206, 2
      %s210 = sadd.s32 %s208, %s209
      %s211 = smul.addr %s210, 4
      %s212 = scalar_lea.vmem %s0, %s211
      %s213 = smul.u32 16, %s18
      %s214 = smul.u32 2, %s19
      %s215 = smul.u32 32, %s19
      %p216 = scmp.lt.s32.totalorder %s215, 31
      %s217 = scalar_select %p216, %s215, 31
      %s218 = smul.addr %s217, 4
      %s219 = scalar_lea.vmem %s1, %s218
      %s220 = smul.u32 32, %s19
      %s221 = smul.u32 16, %s18
      %p222 = scmp.lt.s32.totalorder %s221, 31
      %s223 = scalar_select %p222, %s221, 31
      %s224 = smul.addr %s223, 4
      %s225 = scalar_lea.vmem %s3, %s224
      %s226 = smul.u32 16, %s18
      %p227 = scmp.eq.s32.totalorder %s19, 0
      // Predicated region
      $region33: #{sgc_forward.4} parent=31 // pred_check
        %p228 = pneg %p227
      $region34: #{sgc_forward.4} parent=31 // pred_check_branch
        %230 = sbr.rel (%p228) target = $region36
      $region35: #{sgc_forward.4} parent=31 // pred_region
        %231 = vst [vmem:[#allocation2] sm:$0xff] 0.0
        %232 = vst [vmem:[#allocation2 + $0x8] sm:$0xff] 0.0
        %233 = vst [vmem:[#allocation2 + $0x10] sm:$0xff] 0.0
        %234 = vst [vmem:[#allocation2 + $0x18] sm:$0xff] 0.0
        %235 = vst [vmem:[#allocation2 + $0x20] sm:$0xff] 0.0
        %236 = vst [vmem:[#allocation2 + $0x28] sm:$0xff] 0.0
        %237 = vst [vmem:[#allocation2 + $0x30] sm:$0xff] 0.0
        %238 = vst [vmem:[#allocation2 + $0x38] sm:$0xff] 0.0
        %239 = vst [vmem:[#allocation2 + $0x40] sm:$0xff] 0.0
        %240 = vst [vmem:[#allocation2 + $0x48] sm:$0xff] 0.0
        %241 = vst [vmem:[#allocation2 + $0x50] sm:$0xff] 0.0
        %242 = vst [vmem:[#allocation2 + $0x58] sm:$0xff] 0.0
        %243 = vst [vmem:[#allocation2 + $0x60] sm:$0xff] 0.0
        %244 = vst [vmem:[#allocation2 + $0x68] sm:$0xff] 0.0
        %245 = vst [vmem:[#allocation2 + $0x70] sm:$0xff] 0.0
        %246 = vst [vmem:[#allocation2 + $0x78] sm:$0xff] 0.0
      $region36: #{sgc_forward.4} parent=31 // pred_fallthru
        _
      %v247 = vld [vmem:[#allocation2] sm:$0xff]
      %v248 = vld [vmem:[#allocation2 + $0x8] sm:$0xff]
      %v249 = vld [vmem:[#allocation2 + $0x10] sm:$0xff]
      %v250 = vld [vmem:[#allocation2 + $0x18] sm:$0xff]
      %v251 = vld [vmem:[#allocation2 + $0x20] sm:$0xff]
      %v252 = vld [vmem:[#allocation2 + $0x28] sm:$0xff]
      %v253 = vld [vmem:[#allocation2 + $0x30] sm:$0xff]
      %v254 = vld [vmem:[#allocation2 + $0x38] sm:$0xff]
      %v255 = vld [vmem:[#allocation2 + $0x40] sm:$0xff]
      %v256 = vld [vmem:[#allocation2 + $0x48] sm:$0xff]
      %v257 = vld [vmem:[#allocation2 + $0x50] sm:$0xff]
      %v258 = vld [vmem:[#allocation2 + $0x58] sm:$0xff]
      %v259 = vld [vmem:[#allocation2 + $0x60] sm:$0xff]
      %v260 = vld [vmem:[#allocation2 + $0x68] sm:$0xff]
      %v261 = vld [vmem:[#allocation2 + $0x70] sm:$0xff]
      %v262 = vld [vmem:[#allocation2 + $0x78] sm:$0xff]
      %v263 = vld [vmem:[%s212] sm:$0xff]
      %v264 = vld [vmem:[%s212 + $0x8] sm:$0xff]
      %v265 = vld [vmem:[%s212 + $0x10] sm:$0xff]
      %v266 = vld [vmem:[%s212 + $0x18] sm:$0xff]
      %v267 = vld [vmem:[%s212 + $0x20] sm:$0xff]
      %v268 = vld [vmem:[%s212 + $0x28] sm:$0xff]
      %v269 = vld [vmem:[%s212 + $0x30] sm:$0xff]
      %v270 = vld [vmem:[%s212 + $0x38] sm:$0xff]
      %v271 = vld [vmem:[%s212 + $0x40] sm:$0xff]
      %v272 = vld [vmem:[%s212 + $0x48] sm:$0xff]
      %v273 = vld [vmem:[%s212 + $0x50] sm:$0xff]
      %v274 = vld [vmem:[%s212 + $0x58] sm:$0xff]
      %v275 = vld [vmem:[%s212 + $0x60] sm:$0xff]
      %v276 = vld [vmem:[%s212 + $0x68] sm:$0xff]
      %v277 = vld [vmem:[%s212 + $0x70] sm:$0xff]
      %v278 = vld [vmem:[%s212 + $0x78] sm:$0xff]
      %v279 = vld [vmem:[%s219] sm:$0xf]
      %v280 = vld [vmem:[%s219 + $0x4] sm:$0xf]
      %v281 = vld [vmem:[%s219 + $0x8] sm:$0xf]
      %v282 = vld [vmem:[%s219 + $0xc] sm:$0xf]
      %v283 = vld [vmem:[%s219 + $0x10] sm:$0xf]
      %v284 = vld [vmem:[%s219 + $0x14] sm:$0xf]
      %v285 = vld [vmem:[%s219 + $0x18] sm:$0xf]
      %v286 = vld [vmem:[%s219 + $0x1c] sm:$0xf]
      %v287 = vld [vmem:[%s219 + $0x20] sm:$0xf]
      %v288 = vld [vmem:[%s219 + $0x24] sm:$0xf]
      %v289 = vld [vmem:[%s219 + $0x28] sm:$0xf]
      %v290 = vld [vmem:[%s219 + $0x2c] sm:$0xf]
      %v291 = vld [vmem:[%s219 + $0x30] sm:$0xf]
      %v292 = vld [vmem:[%s219 + $0x34] sm:$0xf]
      %v293 = vld [vmem:[%s219 + $0x38] sm:$0xf]
      %v294 = vld [vmem:[%s219 + $0x3c] sm:$0xf]
      %v295 = vld [vmem:[%s219 + $0x40] sm:$0xf]
      %v296 = vld [vmem:[%s219 + $0x44] sm:$0xf]
      %v297 = vld [vmem:[%s219 + $0x48] sm:$0xf]
      %v298 = vld [vmem:[%s219 + $0x4c] sm:$0xf]
      %v299 = vld [vmem:[%s219 + $0x50] sm:$0xf]
      %v300 = vld [vmem:[%s219 + $0x54] sm:$0xf]
      %v301 = vld [vmem:[%s219 + $0x58] sm:$0xf]
      %v302 = vld [vmem:[%s219 + $0x5c] sm:$0xf]
      %v303 = vld [vmem:[%s219 + $0x60] sm:$0xf]
      %v304 = vld [vmem:[%s219 + $0x64] sm:$0xf]
      %v305 = vld [vmem:[%s219 + $0x68] sm:$0xf]
      %v306 = vld [vmem:[%s219 + $0x6c] sm:$0xf]
      %v307 = vld [vmem:[%s219 + $0x70] sm:$0xf]
      %v308 = vld [vmem:[%s219 + $0x74] sm:$0xf]
      %v309 = vld [vmem:[%s219 + $0x78] sm:$0xf]
      %v310 = vld [vmem:[%s219 + $0x7c] sm:$0xf]
      %v327 = vunpack.c.l.b16 %v263
      %v328 = vunpack.c.h.b16 %v263
      %v329 = vunpack.c.l.b16 %v264
      %v330 = vunpack.c.h.b16 %v264
      %v331 = vunpack.c.l.b16 %v265
      %v332 = vunpack.c.h.b16 %v265
      %v333 = vunpack.c.l.b16 %v266
      %v334 = vunpack.c.h.b16 %v266
      %v335 = vunpack.c.l.b16 %v267
      %v336 = vunpack.c.h.b16 %v267
      %v337 = vunpack.c.l.b16 %v268
      %v338 = vunpack.c.h.b16 %v268
      %v339 = vunpack.c.l.b16 %v269
      %v340 = vunpack.c.h.b16 %v269
      %v341 = vunpack.c.l.b16 %v270
      %v342 = vunpack.c.h.b16 %v270
      %v343 = vunpack.c.l.b16 %v271
      %v344 = vunpack.c.h.b16 %v271
      %v345 = vunpack.c.l.b16 %v272
      %v346 = vunpack.c.h.b16 %v272
      %v347 = vunpack.c.l.b16 %v273
      %v348 = vunpack.c.h.b16 %v273
      %v349 = vunpack.c.l.b16 %v274
      %v350 = vunpack.c.h.b16 %v274
      %v351 = vunpack.c.l.b16 %v275
      %v352 = vunpack.c.h.b16 %v275
      %v353 = vunpack.c.l.b16 %v276
      %v354 = vunpack.c.h.b16 %v276
      %v355 = vunpack.c.l.b16 %v277
      %v356 = vunpack.c.h.b16 %v277
      %v357 = vunpack.c.l.b16 %v278
      %v358 = vunpack.c.h.b16 %v278
      %v359 = vpack.c.b16 %v329, %v327
      %v360 = vpack.c.b16 %v330, %v328
      %v361 = vpack.c.b16 %v333, %v331
      %v362 = vpack.c.b16 %v334, %v332
      %v363 = vpack.c.b16 %v337, %v335
      %v364 = vpack.c.b16 %v338, %v336
      %v365 = vpack.c.b16 %v341, %v339
      %v366 = vpack.c.b16 %v342, %v340
      %v367 = vpack.c.b16 %v345, %v343
      %v368 = vpack.c.b16 %v346, %v344
      %v369 = vpack.c.b16 %v349, %v347
      %v370 = vpack.c.b16 %v350, %v348
      %v371 = vpack.c.b16 %v353, %v351
      %v372 = vpack.c.b16 %v354, %v352
      %v373 = vpack.c.b16 %v357, %v355
      %v374 = vpack.c.b16 %v358, %v356
      %v423 = vunpack.c.l.b16 %v279
      %v424 = vunpack.c.l.b16 %v280
      %v425 = vunpack.c.l.b16 %v281
      %v426 = vunpack.c.l.b16 %v282
      %v427 = vunpack.c.l.b16 %v283
      %v428 = vunpack.c.l.b16 %v284
      %v429 = vunpack.c.l.b16 %v285
      %v430 = vunpack.c.l.b16 %v286
      %v431 = vunpack.c.l.b16 %v287
      %v432 = vunpack.c.l.b16 %v288
      %v433 = vunpack.c.l.b16 %v289
      %v434 = vunpack.c.l.b16 %v290
      %v435 = vunpack.c.l.b16 %v291
      %v436 = vunpack.c.l.b16 %v292
      %v437 = vunpack.c.l.b16 %v293
      %v438 = vunpack.c.l.b16 %v294
      %v439 = vunpack.c.l.b16 %v295
      %v440 = vunpack.c.l.b16 %v296
      %v441 = vunpack.c.l.b16 %v297
      %v442 = vunpack.c.l.b16 %v298
      %v443 = vunpack.c.l.b16 %v299
      %v444 = vunpack.c.l.b16 %v300
      %v445 = vunpack.c.l.b16 %v301
      %v446 = vunpack.c.l.b16 %v302
      %v447 = vunpack.c.l.b16 %v303
      %v448 = vunpack.c.l.b16 %v304
      %v449 = vunpack.c.l.b16 %v305
      %v450 = vunpack.c.l.b16 %v306
      %v451 = vunpack.c.l.b16 %v307
      %v452 = vunpack.c.l.b16 %v308
      %v453 = vunpack.c.l.b16 %v309
      %v454 = vunpack.c.l.b16 %v310
      %v455 = vpack.c.b16 %v424, %v423
      %v456 = vpack.c.b16 %v426, %v425
      %v457 = vpack.c.b16 %v428, %v427
      %v458 = vpack.c.b16 %v430, %v429
      %v459 = vpack.c.b16 %v432, %v431
      %v460 = vpack.c.b16 %v434, %v433
      %v461 = vpack.c.b16 %v436, %v435
      %v462 = vpack.c.b16 %v438, %v437
      %v463 = vpack.c.b16 %v440, %v439
      %v464 = vpack.c.b16 %v442, %v441
      %v465 = vpack.c.b16 %v444, %v443
      %v466 = vpack.c.b16 %v446, %v445
      %v467 = vpack.c.b16 %v448, %v447
      %v468 = vpack.c.b16 %v450, %v449
      %v469 = vpack.c.b16 %v452, %v451
      %v470 = vpack.c.b16 %v454, %v453
      %487 = vmatpush.bf16.msra.mxu0 %v462
      %488 = vmatpush.bf16.msra.mxu0 %v461
      %489 = vmatpush.bf16.msra.mxu0 %v460
      %490 = vmatpush.bf16.msra.mxu0 %v459
      %491 = vmatpush.bf16.msra.mxu0 %v458
      %492 = vmatpush.bf16.msra.mxu0 %v457
      %493 = vmatpush.bf16.msra.mxu0 %v456
      %494 = vmatpush.bf16.msra.mxu0 %v455
      %495 = vmatmul.bf16.gmra.mxu0 %v359
      %v496 = vpop.f32.mrf.mxu0
      %v497 = vadd.f32 0.0, %v496
      %v498 = vpop.f32.mrf.mxu0
      %v499 = vadd.f32 0.0, %v498
      %500 = vmatmul.bf16.gmra.mxu0 %v361
      %v501 = vpop.f32.mrf.mxu0
      %v502 = vadd.f32 0.0, %v501
      %v503 = vpop.f32.mrf.mxu0
      %v504 = vadd.f32 0.0, %v503
      %505 = vmatmul.bf16.gmra.mxu0 %v363
      %v506 = vpop.f32.mrf.mxu0
      %v507 = vadd.f32 0.0, %v506
      %v508 = vpop.f32.mrf.mxu0
      %v509 = vadd.f32 0.0, %v508
      %510 = vmatmul.bf16.gmra.mxu0 %v365
      %v511 = vpop.f32.mrf.mxu0
      %v512 = vadd.f32 0.0, %v511
      %v513 = vpop.f32.mrf.mxu0
      %v514 = vadd.f32 0.0, %v513
      %515 = vmatmul.bf16.gmra.mxu0 %v367
      %v516 = vpop.f32.mrf.mxu0
      %v517 = vadd.f32 0.0, %v516
      %v518 = vpop.f32.mrf.mxu0
      %v519 = vadd.f32 0.0, %v518
      %520 = vmatmul.bf16.gmra.mxu0 %v369
      %v521 = vpop.f32.mrf.mxu0
      %v522 = vadd.f32 0.0, %v521
      %v523 = vpop.f32.mrf.mxu0
      %v524 = vadd.f32 0.0, %v523
      %525 = vmatmul.bf16.gmra.mxu0 %v371
      %v526 = vpop.f32.mrf.mxu0
      %v527 = vadd.f32 0.0, %v526
      %v528 = vpop.f32.mrf.mxu0
      %v529 = vadd.f32 0.0, %v528
      %530 = vmatmul.bf16.gmra.mxu0 %v373
      %v531 = vpop.f32.mrf.mxu0
      %v532 = vadd.f32 0.0, %v531
      %v533 = vpop.f32.mrf.mxu0
      %v534 = vadd.f32 0.0, %v533
      %535 = vdwg.mxu0
      %536 = vmatpush.bf16.msra.mxu0 %v470
      %537 = vmatpush.bf16.msra.mxu0 %v469
      %538 = vmatpush.bf16.msra.mxu0 %v468
      %539 = vmatpush.bf16.msra.mxu0 %v467
      %540 = vmatpush.bf16.msra.mxu0 %v466
      %541 = vmatpush.bf16.msra.mxu0 %v465
      %542 = vmatpush.bf16.msra.mxu0 %v464
      %543 = vmatpush.bf16.msra.mxu0 %v463
      %544 = vmatmul.bf16.gmra.mxu0 %v360
      %v545 = vpop.f32.mrf.mxu0
      %v546 = vadd.f32 %v497, %v545
      %v547 = vpop.f32.mrf.mxu0
      %v548 = vadd.f32 %v499, %v547
      %549 = vmatmul.bf16.gmra.mxu0 %v362
      %v550 = vpop.f32.mrf.mxu0
      %v551 = vadd.f32 %v502, %v550
      %v552 = vpop.f32.mrf.mxu0
      %v553 = vadd.f32 %v504, %v552
      %554 = vmatmul.bf16.gmra.mxu0 %v364
      %v555 = vpop.f32.mrf.mxu0
      %v556 = vadd.f32 %v507, %v555
      %v557 = vpop.f32.mrf.mxu0
      %v558 = vadd.f32 %v509, %v557
      %559 = vmatmul.bf16.gmra.mxu0 %v366
      %v560 = vpop.f32.mrf.mxu0
      %v561 = vadd.f32 %v512, %v560
      %v562 = vpop.f32.mrf.mxu0
      %v563 = vadd.f32 %v514, %v562
      %564 = vmatmul.bf16.gmra.mxu0 %v368
      %v565 = vpop.f32.mrf.mxu0
      %v566 = vadd.f32 %v517, %v565
      %v567 = vpop.f32.mrf.mxu0
      %v568 = vadd.f32 %v519, %v567
      %569 = vmatmul.bf16.gmra.mxu0 %v370
      %v570 = vpop.f32.mrf.mxu0
      %v571 = vadd.f32 %v522, %v570
      %v572 = vpop.f32.mrf.mxu0
      %v573 = vadd.f32 %v524, %v572
      %574 = vmatmul.bf16.gmra.mxu0 %v372
      %v575 = vpop.f32.mrf.mxu0
      %v576 = vadd.f32 %v527, %v575
      %v577 = vpop.f32.mrf.mxu0
      %v578 = vadd.f32 %v529, %v577
      %579 = vmatmul.bf16.gmra.mxu0 %v374
      %v580 = vpop.f32.mrf.mxu0
      %v581 = vadd.f32 %v532, %v580
      %v582 = vpop.f32.mrf.mxu0
      %v583 = vadd.f32 %v534, %v582
      %584 = vdwg.mxu0
      %v585 = vadd.f32 %v247, %v546
      %v586 = vadd.f32 %v248, %v548
      %v587 = vadd.f32 %v249, %v551
      %v588 = vadd.f32 %v250, %v553
      %v589 = vadd.f32 %v251, %v556
      %v590 = vadd.f32 %v252, %v558
      %v591 = vadd.f32 %v253, %v561
      %v592 = vadd.f32 %v254, %v563
      %v593 = vadd.f32 %v255, %v566
      %v594 = vadd.f32 %v256, %v568
      %v595 = vadd.f32 %v257, %v571
      %v596 = vadd.f32 %v258, %v573
      %v597 = vadd.f32 %v259, %v576
      %v598 = vadd.f32 %v260, %v578
      %v599 = vadd.f32 %v261, %v581
      %v600 = vadd.f32 %v262, %v583
      %601 = vst [vmem:[#allocation2] sm:$0xff] %v585
      %602 = vst [vmem:[#allocation2 + $0x8] sm:$0xff] %v586
      %603 = vst [vmem:[#allocation2 + $0x10] sm:$0xff] %v587
      %604 = vst [vmem:[#allocation2 + $0x18] sm:$0xff] %v588
      %605 = vst [vmem:[#allocation2 + $0x20] sm:$0xff] %v589
      %606 = vst [vmem:[#allocation2 + $0x28] sm:$0xff] %v590
      %607 = vst [vmem:[#allocation2 + $0x30] sm:$0xff] %v591
      %608 = vst [vmem:[#allocation2 + $0x38] sm:$0xff] %v592
      %609 = vst [vmem:[#allocation2 + $0x40] sm:$0xff] %v593
      %610 = vst [vmem:[#allocation2 + $0x48] sm:$0xff] %v594
      %611 = vst [vmem:[#allocation2 + $0x50] sm:$0xff] %v595
      %612 = vst [vmem:[#allocation2 + $0x58] sm:$0xff] %v596
      %613 = vst [vmem:[#allocation2 + $0x60] sm:$0xff] %v597
      %614 = vst [vmem:[#allocation2 + $0x68] sm:$0xff] %v598
      %615 = vst [vmem:[#allocation2 + $0x70] sm:$0xff] %v599
      %616 = vst [vmem:[#allocation2 + $0x78] sm:$0xff] %v600
      // Predicated region
      $region37: #{sgc_forward.4} parent=31 // pred_check
        %p617 = pneg %p227
      $region38: #{sgc_forward.4} parent=31 // pred_check_branch
        %619 = sbr.rel (%p617) target = $region40
      $region39: #{sgc_forward.4} parent=31 // pred_region
        %v620 = vld [vmem:[#allocation2] sm:$0xff]
        %v621 = vld [vmem:[#allocation2 + $0x8] sm:$0xff]
        %v622 = vld [vmem:[#allocation2 + $0x10] sm:$0xff]
        %v623 = vld [vmem:[#allocation2 + $0x18] sm:$0xff]
        %v624 = vld [vmem:[#allocation2 + $0x20] sm:$0xff]
        %v625 = vld [vmem:[#allocation2 + $0x28] sm:$0xff]
        %v626 = vld [vmem:[#allocation2 + $0x30] sm:$0xff]
        %v627 = vld [vmem:[#allocation2 + $0x38] sm:$0xff]
        %v628 = vld [vmem:[#allocation2 + $0x40] sm:$0xff]
        %v629 = vld [vmem:[#allocation2 + $0x48] sm:$0xff]
        %v630 = vld [vmem:[#allocation2 + $0x50] sm:$0xff]
        %v631 = vld [vmem:[#allocation2 + $0x58] sm:$0xff]
        %v632 = vld [vmem:[#allocation2 + $0x60] sm:$0xff]
        %v633 = vld [vmem:[#allocation2 + $0x68] sm:$0xff]
        %v634 = vld [vmem:[#allocation2 + $0x70] sm:$0xff]
        %v635 = vld [vmem:[#allocation2 + $0x78] sm:$0xff]
        %v636 = vpack.c.bf16 %v620, %v620
        %v637 = vpack.c.bf16 %v621, %v621
        %v638 = vpack.c.bf16 %v622, %v622
        %v639 = vpack.c.bf16 %v623, %v623
        %v640 = vpack.c.bf16 %v624, %v624
        %v641 = vpack.c.bf16 %v625, %v625
        %v642 = vpack.c.bf16 %v626, %v626
        %v643 = vpack.c.bf16 %v627, %v627
        %v644 = vpack.c.bf16 %v628, %v628
        %v645 = vpack.c.bf16 %v629, %v629
        %v646 = vpack.c.bf16 %v630, %v630
        %v647 = vpack.c.bf16 %v631, %v631
        %v648 = vpack.c.bf16 %v632, %v632
        %v649 = vpack.c.bf16 %v633, %v633
        %v650 = vpack.c.bf16 %v634, %v634
        %v651 = vpack.c.bf16 %v635, %v635
        %652 = vst [vmem:[%s225] sm:$0xf] %v636
        %653 = vst [vmem:[%s225 + $0x4] sm:$0xf] %v637
        %654 = vst [vmem:[%s225 + $0x8] sm:$0xf] %v638
        %655 = vst [vmem:[%s225 + $0xc] sm:$0xf] %v639
        %656 = vst [vmem:[%s225 + $0x10] sm:$0xf] %v640
        %657 = vst [vmem:[%s225 + $0x14] sm:$0xf] %v641
        %658 = vst [vmem:[%s225 + $0x18] sm:$0xf] %v642
        %659 = vst [vmem:[%s225 + $0x1c] sm:$0xf] %v643
        %660 = vst [vmem:[%s225 + $0x20] sm:$0xf] %v644
        %661 = vst [vmem:[%s225 + $0x24] sm:$0xf] %v645
        %662 = vst [vmem:[%s225 + $0x28] sm:$0xf] %v646
        %663 = vst [vmem:[%s225 + $0x2c] sm:$0xf] %v647
        %664 = vst [vmem:[%s225 + $0x30] sm:$0xf] %v648
        %665 = vst [vmem:[%s225 + $0x34] sm:$0xf] %v649
        %666 = vst [vmem:[%s225 + $0x38] sm:$0xf] %v650
        %667 = vst [vmem:[%s225 + $0x3c] sm:$0xf] %v651
      $region40: #{sgc_forward.4} parent=31 // pred_fallthru
        _
      %s668 = smul.u32 16, %s18
      %p669 = scmp.lt.s32.totalorder %s668, 31
      %s670 = scalar_select %p669, %s668, 31
      %s671 = smul.addr %s670, 4
      %s672 = scalar_lea.vmem %s3, %s671
      // Predicated region
      $region41: #{sgc_forward.4} parent=31 // pred_check
        %p673 = pneg %p119
      $region42: #{sgc_forward.4} parent=31 // pred_check_branch
        %675 = sbr.rel (%p673) target = $region44
      $region43: #{sgc_forward.4} parent=31 // pred_region
        %s676 = smul.u32 16, %s18
      $region44: #{sgc_forward.4} parent=31 // pred_fallthru
        _
    $region32: #{sgc_forward.4} parent=5 // pred_fallthru
      _
    %p677 = scmp.le.s32.totalorder 2, %s9
    // Predicated region
    $region45: #{sgc_forward.4} parent=5 // pred_check
      %p678 = pneg %p677
    $region46: #{sgc_forward.4} parent=5 // pred_check_branch
      %680 = sbr.rel (%p678) target = $region48
    $region47: #{sgc_forward.4} parent=5 // pred_region
      %s681 = ssub.s32 %s9, 2
      // Predicated region
      $region49: #{sgc_forward.4} parent=47 // pred_check
        %p682 = pneg %p125
      $region50: #{sgc_forward.4} parent=47 // pred_check_branch
        %684 = sbr.rel (%p682) target = $region52
      $region51: #{sgc_forward.4} parent=47 // pred_region
        %s685 = smul.u32 16, %s20
        %p686 = scmp.lt.s32.totalorder %s685, 31
        %s687 = scalar_select %p686, %s685, 31
        %s688 = smul.addr %s687, 4
        %s689 = scalar_lea.vmem %s3, %s688
      $region52: #{sgc_forward.4} parent=47 // pred_fallthru
        _
    $region48: #{sgc_forward.4} parent=5 // pred_fallthru
      _
  $region6: #{sgc_forward.4} parent=0 // loop_footer
    %s13 = sadd.s32 1, %s9
  $region7: #{sgc_forward.4} parent=0 // loop_footer_branch
    %8 = sbr.rel target = $region3
  $region8: #{sgc_forward.4} parent=0 // loop_exit
    _

// kernel: sgc_forward.5
$region0: #{sgc_forward.5}
  #allocation0 [shape = 'u32[]', space=smem, size = 0x4, offset = 0x4, fixed_abs, tag = 'smem constant byte address 0x4 - core index']
  #allocation1 [shape = 'u32[72,128]{1,0:T(1,128)}', space=vmem, size = 0x9000, scoped, tag = 'internal scratch']
  #allocation2 [shape = 'f32[128,128]{1,0:T(8,128)}', space=vmem, size = 0x10000, scoped, tag = 'scratch operand']
  %s0 = inlined_call_operand.vmem [shape: bf16[256,256], index: 0, kind: input, shape index: {}]
  %s1 = inlined_call_operand.vmem [shape: bf16[256,128], index: 1, kind: input, shape index: {}]
  %s2 = inlined_call_operand.vmem [shape: f32[1,128], index: 2, kind: input, shape index: {}]
  %s3 = inlined_call_operand.vmem [shape: f32[256,128], index: 3, kind: output, shape index: {}]
  %s4 = sld [smem:[#allocation0]]
  $region53: #{sgc_forward.5} parent=0
    _
  %s6 = ssub.s32 1, %s4
  %s7 = scalar_select 0, %s6, %s4
  loop: start=0, step=1, limit=4
  $region2: #{sgc_forward.5} parent=0 // loop_pre_header
    _
  $region3: #{sgc_forward.5} parent=0 // loop_header
    %s9 = sphi 0, %s13
    %p10 = scmp.ge.s32.totalorder %s9, 4
    %s16 = sphi 0, %s28
    %s17 = sphi 0, %s24
    %s18 = sphi 0, %s16
    %s19 = sphi 0, %s17
    %s20 = sphi 0, %s18
    %s21 = sphi 0, %s19
    %s33 = sphi 0, %s35
    %s36 = sphi 0, %s33
    %s37 = sphi 0, %s36
    %s53 = sphi 0, %s37
    %s59 = sphi 0, %s61
    %s62 = sphi 0, %s59
    %s63 = sphi 0, %s62
    %s79 = sphi 0, %s63
    %s83 = sphi 0, %s83
    %s85 = sphi 0, %s83
    %s86 = sphi 0, %s85
    %s100 = sphi 0, %s86
    %s106 = sphi 0, %s108
    %s109 = sphi 0, %s106
    %s110 = sphi 0, %s109
    %s126 = sphi 0, %s110
  $region4: #{sgc_forward.5} parent=0 // loop_header_branch
    %12 = sbr.rel (%p10) target = $region8
  $region5: #{sgc_forward.5} parent=0 // loop_body
    %s14 = ssub.s32 %s9, 1
    %s15 = ssub.s32 %s9, 2
    %s22 = sadd.s32 1, %s17
    %p23 = scmp.ge.s32.totalorder %s22, 1
    %s24 = scalar_select %p23, 0, %s22
    %s25 = sadd.s32 1, %s16
    %s26 = scalar_select %p23, %s25, %s16
    %p27 = scmp.ge.s32.totalorder %s26, 2
    %s28 = scalar_select %p27, 0, %s26
    %s29 = ssub.s32 %s16, %s28
    %s30 = ssub.s32 %s17, %s24
    %s31 = sor.u32 %s29, %s30
    %p32 = scmp.eq.s32.totalorder %s31, 0
    %s34 = sadd.s32 %s33, 1
    %s35 = scalar_select %p32, %s33, %s34
    %p38 = pneg %p32
    %p39 = scmp.eq.s32.totalorder %s9, 1
    %p40 = por %p38, %p39
    %p41 = scmp.ne.s32.totalorder %s33, %s36
    %p42 = scmp.eq.s32.totalorder %s9, 0
    %p43 = por %p41, %p42
    %p44 = scmp.ne.s32.totalorder %s33, %s36
    %p45 = scmp.eq.s32.totalorder %s14, 1
    %p46 = por %p44, %p45
    %p47 = scmp.ne.s32.totalorder %s36, %s37
    %p48 = scmp.eq.s32.totalorder %s14, 0
    %p49 = por %p47, %p48
    %p50 = scmp.ne.s32.totalorder %s36, %s37
    %p51 = scmp.eq.s32.totalorder %s15, 1
    %p52 = por %p50, %p51
    %p54 = scmp.ne.s32.totalorder %s37, %s53
    %p55 = scmp.eq.s32.totalorder %s15, 0
    %p56 = por %p54, %p55
    %s57 = ssub.s32 %s17, %s24
    %p58 = scmp.eq.s32.totalorder %s57, 0
    %s60 = sadd.s32 %s59, 1
    %s61 = scalar_select %p58, %s59, %s60
    %p64 = pneg %p58
    %p65 = scmp.eq.s32.totalorder %s9, 1
    %p66 = por %p64, %p65
    %p67 = scmp.ne.s32.totalorder %s59, %s62
    %p68 = scmp.eq.s32.totalorder %s9, 0
    %p69 = por %p67, %p68
    %p70 = scmp.ne.s32.totalorder %s59, %s62
    %p71 = scmp.eq.s32.totalorder %s14, 1
    %p72 = por %p70, %p71
    %p73 = scmp.ne.s32.totalorder %s62, %s63
    %p74 = scmp.eq.s32.totalorder %s14, 0
    %p75 = por %p73, %p74
    %p76 = scmp.ne.s32.totalorder %s62, %s63
    %p77 = scmp.eq.s32.totalorder %s15, 1
    %p78 = por %p76, %p77
    %p80 = scmp.ne.s32.totalorder %s63, %s79
    %p81 = scmp.eq.s32.totalorder %s15, 0
    %p82 = por %p80, %p81
    %s84 = sadd.s32 %s83, 1
    %p87 = scmp.eq.s32.totalorder %s9, 1
    %p88 = scmp.ne.s32.totalorder %s83, %s85
    %p89 = scmp.eq.s32.totalorder %s9, 0
    %p90 = por %p88, %p89
    %p91 = scmp.ne.s32.totalorder %s83, %s85
    %p92 = scmp.eq.s32.totalorder %s14, 1
    %p93 = por %p91, %p92
    %p94 = scmp.ne.s32.totalorder %s85, %s86
    %p95 = scmp.eq.s32.totalorder %s14, 0
    %p96 = por %p94, %p95
    %p97 = scmp.ne.s32.totalorder %s85, %s86
    %p98 = scmp.eq.s32.totalorder %s15, 1
    %p99 = por %p97, %p98
    %p101 = scmp.ne.s32.totalorder %s86, %s100
    %p102 = scmp.eq.s32.totalorder %s15, 0
    %p103 = por %p101, %p102
    %s104 = ssub.s32 %s16, %s28
    %p105 = scmp.eq.s32.totalorder %s104, 0
    %s107 = sadd.s32 %s106, 1
    %s108 = scalar_select %p105, %s106, %s107
    %p111 = pneg %p105
    %p112 = scmp.eq.s32.totalorder %s9, 1
    %p113 = por %p111, %p112
    %p114 = scmp.ne.s32.totalorder %s106, %s109
    %p115 = scmp.eq.s32.totalorder %s9, 0
    %p116 = por %p114, %p115
    %p117 = scmp.ne.s32.totalorder %s106, %s109
    %p118 = scmp.eq.s32.totalorder %s14, 1
    %p119 = por %p117, %p118
    %p120 = scmp.ne.s32.totalorder %s109, %s110
    %p121 = scmp.eq.s32.totalorder %s14, 0
    %p122 = por %p120, %p121
    %p123 = scmp.ne.s32.totalorder %s109, %s110
    %p124 = scmp.eq.s32.totalorder %s15, 1
    %p125 = por %p123, %p124
    %p127 = scmp.ne.s32.totalorder %s110, %s126
    %p128 = scmp.eq.s32.totalorder %s15, 0
    %p129 = por %p127, %p128
    %p130 = scmp.le.s32.totalorder 1, %s9
    %p131 = scmp.lt.s32.totalorder %s9, 3
    %p132 = pnand %p130, %p131
    %p133 = pneg %p132
    // Predicated region
    $region9: #{sgc_forward.5} parent=5 // pred_check
      _
    $region10: #{sgc_forward.5} parent=5 // pred_check_branch
      %135 = sbr.rel (%p132) target = $region12
    $region11: #{sgc_forward.5} parent=5 // pred_region
      %s136 = ssub.s32 %s9, 1
      // Predicated region
      $region13: #{sgc_forward.5} parent=11 // pred_check
        %p137 = pneg %p75
      $region14: #{sgc_forward.5} parent=11 // pred_check_branch
        %139 = sbr.rel (%p137) target = $region16
      $region15: #{sgc_forward.5} parent=11 // pred_region
        %s140 = smul.u32 32, %s19
        %p141 = scmp.lt.s32.totalorder %s140, 31
        %s142 = scalar_select %p141, %s140, 31
        %s143 = smul.addr %s142, 4
        %s144 = scalar_lea.vmem %s1, %s143
        %s145 = smul.u32 32, %s19
      $region16: #{sgc_forward.5} parent=11 // pred_fallthru
        _
      // Predicated region
      $region17: #{sgc_forward.5} parent=11 // pred_check
        %p146 = pneg %p96
      $region18: #{sgc_forward.5} parent=11 // pred_check_branch
        %148 = sbr.rel (%p146) target = $region20
      $region19: #{sgc_forward.5} parent=11 // pred_region
        _
      $region20: #{sgc_forward.5} parent=11 // pred_fallthru
        _
    $region12: #{sgc_forward.5} parent=5 // pred_fallthru
      _
    %p149 = scmp.lt.s32.totalorder %s9, 2
    // Predicated region
    $region21: #{sgc_forward.5} parent=5 // pred_check
      %p150 = pneg %p149
    $region22: #{sgc_forward.5} parent=5 // pred_check_branch
      %152 = sbr.rel (%p150) target = $region24
    $region23: #{sgc_forward.5} parent=5 // pred_region
      // Predicated region
      $region25: #{sgc_forward.5} parent=23 // pred_check
        %p153 = pneg %p43
      $region26: #{sgc_forward.5} parent=23 // pred_check_branch
        %155 = sbr.rel (%p153) target = $region28
      $region27: #{sgc_forward.5} parent=23 // pred_region
        %s156 = smul.u32 16, %s16
        %s157 = smul.u32 2, %s17
        %p158 = scmp.lt.s32.totalorder %s156, 31
        %s159 = scalar_select %p158, %s156, 31
        %p160 = scmp.lt.s32.totalorder %s157, 1
        %s161 = scalar_select %p160, %s157, 1
        %s162 = smul.addr %s159, 2
        %s163 = sadd.s32 %s161, %s162
        %s164 = smul.addr %s163, 4
        %s165 = scalar_lea.vmem %s0, %s164
        %s166 = smul.u32 16, %s16
        %s167 = smul.u32 2, %s17
      $region28: #{sgc_forward.5} parent=23 // pred_fallthru
        _
    $region24: #{sgc_forward.5} parent=5 // pred_fallthru
      _
    %p168 = scmp.le.s32.totalorder 1, %s9
    %p169 = scmp.lt.s32.totalorder %s9, 3
    %p170 = pnand %p168, %p169
    %p171 = pneg %p170
    // Predicated region
    $region29: #{sgc_forward.5} parent=5 // pred_check
      _
    $region30: #{sgc_forward.5} parent=5 // pred_check_branch
      %173 = sbr.rel (%p170) target = $region32
    $region31: #{sgc_forward.5} parent=5 // pred_region
      %s174 = ssub.s32 %s9, 1
      %s175 = smul.u32 16, %s18
      %s176 = smul.u32 2, %s19
      %p177 = scmp.lt.s32.totalorder %s175, 31
      %s178 = scalar_select %p177, %s175, 31
      %p179 = scmp.lt.s32.totalorder %s176, 1
      %s180 = scalar_select %p179, %s176, 1
      %s181 = smul.addr %s178, 2
      %s182 = sadd.s32 %s180, %s181
      %s183 = smul.addr %s182, 4
      %s184 = scalar_lea.vmem %s0, %s183
      %p185 = pneg %p49
      %p186 = pneg %p46
      %s187 = smul.u32 32, %s19
      %p188 = scmp.lt.s32.totalorder %s187, 31
      %s189 = scalar_select %p188, %s187, 31
      %s190 = smul.addr %s189, 4
      %s191 = scalar_lea.vmem %s1, %s190
      %p192 = pneg %p75
      %p193 = pneg %p72
      %p194 = pneg %p96
      %p195 = pneg %p93
      %p196 = pneg %p122
      %p197 = pneg %p119
      %s198 = smul.u32 16, %s18
      %p199 = scmp.lt.s32.totalorder %s198, 31
      %s200 = scalar_select %p199, %s198, 31
      %s201 = smul.addr %s200, 8
      %s202 = scalar_lea.vmem %s3, %s201
      %s203 = smul.u32 16, %s18
      %s204 = smul.u32 2, %s19
      %p205 = scmp.lt.s32.totalorder %s203, 31
      %s206 = scalar_select %p205, %s203, 31
      %p207 = scmp.lt.s32.totalorder %s204, 1
      %s208 = scalar_select %p207, %s204, 1
      %s209 = smul.addr %s206, 2
      %s210 = sadd.s32 %s208, %s209
      %s211 = smul.addr %s210, 4
      %s212 = scalar_lea.vmem %s0, %s211
      %s213 = smul.u32 16, %s18
      %s214 = smul.u32 2, %s19
      %s215 = smul.u32 32, %s19
      %p216 = scmp.lt.s32.totalorder %s215, 31
      %s217 = scalar_select %p216, %s215, 31
      %s218 = smul.addr %s217, 4
      %s219 = scalar_lea.vmem %s1, %s218
      %s220 = smul.u32 32, %s19
      %s221 = smul.u32 16, %s18
      %p222 = scmp.lt.s32.totalorder %s221, 31
      %s223 = scalar_select %p222, %s221, 31
      %s224 = smul.addr %s223, 8
      %s225 = scalar_lea.vmem %s3, %s224
      %s226 = smul.u32 16, %s18
      %p227 = scmp.eq.s32.totalorder %s19, 0
      // Predicated region
      $region33: #{sgc_forward.5} parent=31 // pred_check
        %p228 = pneg %p227
      $region34: #{sgc_forward.5} parent=31 // pred_check_branch
        %230 = sbr.rel (%p228) target = $region36
      $region35: #{sgc_forward.5} parent=31 // pred_region
        %231 = vst [vmem:[#allocation2] sm:$0xff] 0.0
        %232 = vst [vmem:[#allocation2 + $0x8] sm:$0xff] 0.0
        %233 = vst [vmem:[#allocation2 + $0x10] sm:$0xff] 0.0
        %234 = vst [vmem:[#allocation2 + $0x18] sm:$0xff] 0.0
        %235 = vst [vmem:[#allocation2 + $0x20] sm:$0xff] 0.0
        %236 = vst [vmem:[#allocation2 + $0x28] sm:$0xff] 0.0
        %237 = vst [vmem:[#allocation2 + $0x30] sm:$0xff] 0.0
        %238 = vst [vmem:[#allocation2 + $0x38] sm:$0xff] 0.0
        %239 = vst [vmem:[#allocation2 + $0x40] sm:$0xff] 0.0
        %240 = vst [vmem:[#allocation2 + $0x48] sm:$0xff] 0.0
        %241 = vst [vmem:[#allocation2 + $0x50] sm:$0xff] 0.0
        %242 = vst [vmem:[#allocation2 + $0x58] sm:$0xff] 0.0
        %243 = vst [vmem:[#allocation2 + $0x60] sm:$0xff] 0.0
        %244 = vst [vmem:[#allocation2 + $0x68] sm:$0xff] 0.0
        %245 = vst [vmem:[#allocation2 + $0x70] sm:$0xff] 0.0
        %246 = vst [vmem:[#allocation2 + $0x78] sm:$0xff] 0.0
      $region36: #{sgc_forward.5} parent=31 // pred_fallthru
        _
      %v247 = vld [vmem:[#allocation2] sm:$0xff]
      %v248 = vld [vmem:[#allocation2 + $0x8] sm:$0xff]
      %v249 = vld [vmem:[#allocation2 + $0x10] sm:$0xff]
      %v250 = vld [vmem:[#allocation2 + $0x18] sm:$0xff]
      %v251 = vld [vmem:[#allocation2 + $0x20] sm:$0xff]
      %v252 = vld [vmem:[#allocation2 + $0x28] sm:$0xff]
      %v253 = vld [vmem:[#allocation2 + $0x30] sm:$0xff]
      %v254 = vld [vmem:[#allocation2 + $0x38] sm:$0xff]
      %v255 = vld [vmem:[#allocation2 + $0x40] sm:$0xff]
      %v256 = vld [vmem:[#allocation2 + $0x48] sm:$0xff]
      %v257 = vld [vmem:[#allocation2 + $0x50] sm:$0xff]
      %v258 = vld [vmem:[#allocation2 + $0x58] sm:$0xff]
      %v259 = vld [vmem:[#allocation2 + $0x60] sm:$0xff]
      %v260 = vld [vmem:[#allocation2 + $0x68] sm:$0xff]
      %v261 = vld [vmem:[#allocation2 + $0x70] sm:$0xff]
      %v262 = vld [vmem:[#allocation2 + $0x78] sm:$0xff]
      %v263 = vld [vmem:[%s212] sm:$0xff]
      %v264 = vld [vmem:[%s212 + $0x8] sm:$0xff]
      %v265 = vld [vmem:[%s212 + $0x10] sm:$0xff]
      %v266 = vld [vmem:[%s212 + $0x18] sm:$0xff]
      %v267 = vld [vmem:[%s212 + $0x20] sm:$0xff]
      %v268 = vld [vmem:[%s212 + $0x28] sm:$0xff]
      %v269 = vld [vmem:[%s212 + $0x30] sm:$0xff]
      %v270 = vld [vmem:[%s212 + $0x38] sm:$0xff]
      %v271 = vld [vmem:[%s212 + $0x40] sm:$0xff]
      %v272 = vld [vmem:[%s212 + $0x48] sm:$0xff]
      %v273 = vld [vmem:[%s212 + $0x50] sm:$0xff]
      %v274 = vld [vmem:[%s212 + $0x58] sm:$0xff]
      %v275 = vld [vmem:[%s212 + $0x60] sm:$0xff]
      %v276 = vld [vmem:[%s212 + $0x68] sm:$0xff]
      %v277 = vld [vmem:[%s212 + $0x70] sm:$0xff]
      %v278 = vld [vmem:[%s212 + $0x78] sm:$0xff]
      %v279 = vld [vmem:[%s219] sm:$0xf]
      %v280 = vld [vmem:[%s219 + $0x4] sm:$0xf]
      %v281 = vld [vmem:[%s219 + $0x8] sm:$0xf]
      %v282 = vld [vmem:[%s219 + $0xc] sm:$0xf]
      %v283 = vld [vmem:[%s219 + $0x10] sm:$0xf]
      %v284 = vld [vmem:[%s219 + $0x14] sm:$0xf]
      %v285 = vld [vmem:[%s219 + $0x18] sm:$0xf]
      %v286 = vld [vmem:[%s219 + $0x1c] sm:$0xf]
      %v287 = vld [vmem:[%s219 + $0x20] sm:$0xf]
      %v288 = vld [vmem:[%s219 + $0x24] sm:$0xf]
      %v289 = vld [vmem:[%s219 + $0x28] sm:$0xf]
      %v290 = vld [vmem:[%s219 + $0x2c] sm:$0xf]
      %v291 = vld [vmem:[%s219 + $0x30] sm:$0xf]
      %v292 = vld [vmem:[%s219 + $0x34] sm:$0xf]
      %v293 = vld [vmem:[%s219 + $0x38] sm:$0xf]
      %v294 = vld [vmem:[%s219 + $0x3c] sm:$0xf]
      %v295 = vld [vmem:[%s219 + $0x40] sm:$0xf]
      %v296 = vld [vmem:[%s219 + $0x44] sm:$0xf]
      %v297 = vld [vmem:[%s219 + $0x48] sm:$0xf]
      %v298 = vld [vmem:[%s219 + $0x4c] sm:$0xf]
      %v299 = vld [vmem:[%s219 + $0x50] sm:$0xf]
      %v300 = vld [vmem:[%s219 + $0x54] sm:$0xf]
      %v301 = vld [vmem:[%s219 + $0x58] sm:$0xf]
      %v302 = vld [vmem:[%s219 + $0x5c] sm:$0xf]
      %v303 = vld [vmem:[%s219 + $0x60] sm:$0xf]
      %v304 = vld [vmem:[%s219 + $0x64] sm:$0xf]
      %v305 = vld [vmem:[%s219 + $0x68] sm:$0xf]
      %v306 = vld [vmem:[%s219 + $0x6c] sm:$0xf]
      %v307 = vld [vmem:[%s219 + $0x70] sm:$0xf]
      %v308 = vld [vmem:[%s219 + $0x74] sm:$0xf]
      %v309 = vld [vmem:[%s219 + $0x78] sm:$0xf]
      %v310 = vld [vmem:[%s219 + $0x7c] sm:$0xf]
      %v327 = vunpack.c.l.b16 %v263
      %v328 = vunpack.c.h.b16 %v263
      %v329 = vunpack.c.l.b16 %v264
      %v330 = vunpack.c.h.b16 %v264
      %v331 = vunpack.c.l.b16 %v265
      %v332 = vunpack.c.h.b16 %v265
      %v333 = vunpack.c.l.b16 %v266
      %v334 = vunpack.c.h.b16 %v266
      %v335 = vunpack.c.l.b16 %v267
      %v336 = vunpack.c.h.b16 %v267
      %v337 = vunpack.c.l.b16 %v268
      %v338 = vunpack.c.h.b16 %v268
      %v339 = vunpack.c.l.b16 %v269
      %v340 = vunpack.c.h.b16 %v269
      %v341 = vunpack.c.l.b16 %v270
      %v342 = vunpack.c.h.b16 %v270
      %v343 = vunpack.c.l.b16 %v271
      %v344 = vunpack.c.h.b16 %v271
      %v345 = vunpack.c.l.b16 %v272
      %v346 = vunpack.c.h.b16 %v272
      %v347 = vunpack.c.l.b16 %v273
      %v348 = vunpack.c.h.b16 %v273
      %v349 = vunpack.c.l.b16 %v274
      %v350 = vunpack.c.h.b16 %v274
      %v351 = vunpack.c.l.b16 %v275
      %v352 = vunpack.c.h.b16 %v275
      %v353 = vunpack.c.l.b16 %v276
      %v354 = vunpack.c.h.b16 %v276
      %v355 = vunpack.c.l.b16 %v277
      %v356 = vunpack.c.h.b16 %v277
      %v357 = vunpack.c.l.b16 %v278
      %v358 = vunpack.c.h.b16 %v278
      %v359 = vpack.c.b16 %v329, %v327
      %v360 = vpack.c.b16 %v330, %v328
      %v361 = vpack.c.b16 %v333, %v331
      %v362 = vpack.c.b16 %v334, %v332
      %v363 = vpack.c.b16 %v337, %v335
      %v364 = vpack.c.b16 %v338, %v336
      %v365 = vpack.c.b16 %v341, %v339
      %v366 = vpack.c.b16 %v342, %v340
      %v367 = vpack.c.b16 %v345, %v343
      %v368 = vpack.c.b16 %v346, %v344
      %v369 = vpack.c.b16 %v349, %v347
      %v370 = vpack.c.b16 %v350, %v348
      %v371 = vpack.c.b16 %v353, %v351
      %v372 = vpack.c.b16 %v354, %v352
      %v373 = vpack.c.b16 %v357, %v355
      %v374 = vpack.c.b16 %v358, %v356
      %v423 = vunpack.c.l.b16 %v279
      %v424 = vunpack.c.l.b16 %v280
      %v425 = vunpack.c.l.b16 %v281
      %v426 = vunpack.c.l.b16 %v282
      %v427 = vunpack.c.l.b16 %v283
      %v428 = vunpack.c.l.b16 %v284
      %v429 = vunpack.c.l.b16 %v285
      %v430 = vunpack.c.l.b16 %v286
      %v431 = vunpack.c.l.b16 %v287
      %v432 = vunpack.c.l.b16 %v288
      %v433 = vunpack.c.l.b16 %v289
      %v434 = vunpack.c.l.b16 %v290
      %v435 = vunpack.c.l.b16 %v291
      %v436 = vunpack.c.l.b16 %v292
      %v437 = vunpack.c.l.b16 %v293
      %v438 = vunpack.c.l.b16 %v294
      %v439 = vunpack.c.l.b16 %v295
      %v440 = vunpack.c.l.b16 %v296
      %v441 = vunpack.c.l.b16 %v297
      %v442 = vunpack.c.l.b16 %v298
      %v443 = vunpack.c.l.b16 %v299
      %v444 = vunpack.c.l.b16 %v300
      %v445 = vunpack.c.l.b16 %v301
      %v446 = vunpack.c.l.b16 %v302
      %v447 = vunpack.c.l.b16 %v303
      %v448 = vunpack.c.l.b16 %v304
      %v449 = vunpack.c.l.b16 %v305
      %v450 = vunpack.c.l.b16 %v306
      %v451 = vunpack.c.l.b16 %v307
      %v452 = vunpack.c.l.b16 %v308
      %v453 = vunpack.c.l.b16 %v309
      %v454 = vunpack.c.l.b16 %v310
      %v455 = vpack.c.b16 %v424, %v423
      %v456 = vpack.c.b16 %v426, %v425
      %v457 = vpack.c.b16 %v428, %v427
      %v458 = vpack.c.b16 %v430, %v429
      %v459 = vpack.c.b16 %v432, %v431
      %v460 = vpack.c.b16 %v434, %v433
      %v461 = vpack.c.b16 %v436, %v435
      %v462 = vpack.c.b16 %v438, %v437
      %v463 = vpack.c.b16 %v440, %v439
      %v464 = vpack.c.b16 %v442, %v441
      %v465 = vpack.c.b16 %v444, %v443
      %v466 = vpack.c.b16 %v446, %v445
      %v467 = vpack.c.b16 %v448, %v447
      %v468 = vpack.c.b16 %v450, %v449
      %v469 = vpack.c.b16 %v452, %v451
      %v470 = vpack.c.b16 %v454, %v453
      %487 = vmatpush.bf16.msra.mxu0 %v462
      %488 = vmatpush.bf16.msra.mxu0 %v461
      %489 = vmatpush.bf16.msra.mxu0 %v460
      %490 = vmatpush.bf16.msra.mxu0 %v459
      %491 = vmatpush.bf16.msra.mxu0 %v458
      %492 = vmatpush.bf16.msra.mxu0 %v457
      %493 = vmatpush.bf16.msra.mxu0 %v456
      %494 = vmatpush.bf16.msra.mxu0 %v455
      %495 = vmatmul.bf16.gmra.mxu0 %v359
      %v496 = vpop.f32.mrf.mxu0
      %v497 = vadd.f32 0.0, %v496
      %v498 = vpop.f32.mrf.mxu0
      %v499 = vadd.f32 0.0, %v498
      %500 = vmatmul.bf16.gmra.mxu0 %v361
      %v501 = vpop.f32.mrf.mxu0
      %v502 = vadd.f32 0.0, %v501
      %v503 = vpop.f32.mrf.mxu0
      %v504 = vadd.f32 0.0, %v503
      %505 = vmatmul.bf16.gmra.mxu0 %v363
      %v506 = vpop.f32.mrf.mxu0
      %v507 = vadd.f32 0.0, %v506
      %v508 = vpop.f32.mrf.mxu0
      %v509 = vadd.f32 0.0, %v508
      %510 = vmatmul.bf16.gmra.mxu0 %v365
      %v511 = vpop.f32.mrf.mxu0
      %v512 = vadd.f32 0.0, %v511
      %v513 = vpop.f32.mrf.mxu0
      %v514 = vadd.f32 0.0, %v513
      %515 = vmatmul.bf16.gmra.mxu0 %v367
      %v516 = vpop.f32.mrf.mxu0
      %v517 = vadd.f32 0.0, %v516
      %v518 = vpop.f32.mrf.mxu0
      %v519 = vadd.f32 0.0, %v518
      %520 = vmatmul.bf16.gmra.mxu0 %v369
      %v521 = vpop.f32.mrf.mxu0
      %v522 = vadd.f32 0.0, %v521
      %v523 = vpop.f32.mrf.mxu0
      %v524 = vadd.f32 0.0, %v523
      %525 = vmatmul.bf16.gmra.mxu0 %v371
      %v526 = vpop.f32.mrf.mxu0
      %v527 = vadd.f32 0.0, %v526
      %v528 = vpop.f32.mrf.mxu0
      %v529 = vadd.f32 0.0, %v528
      %530 = vmatmul.bf16.gmra.mxu0 %v373
      %v531 = vpop.f32.mrf.mxu0
      %v532 = vadd.f32 0.0, %v531
      %v533 = vpop.f32.mrf.mxu0
      %v534 = vadd.f32 0.0, %v533
      %535 = vdwg.mxu0
      %536 = vmatpush.bf16.msra.mxu0 %v470
      %537 = vmatpush.bf16.msra.mxu0 %v469
      %538 = vmatpush.bf16.msra.mxu0 %v468
      %539 = vmatpush.bf16.msra.mxu0 %v467
      %540 = vmatpush.bf16.msra.mxu0 %v466
      %541 = vmatpush.bf16.msra.mxu0 %v465
      %542 = vmatpush.bf16.msra.mxu0 %v464
      %543 = vmatpush.bf16.msra.mxu0 %v463
      %544 = vmatmul.bf16.gmra.mxu0 %v360
      %v545 = vpop.f32.mrf.mxu0
      %v546 = vadd.f32 %v497, %v545
      %v547 = vpop.f32.mrf.mxu0
      %v548 = vadd.f32 %v499, %v547
      %549 = vmatmul.bf16.gmra.mxu0 %v362
      %v550 = vpop.f32.mrf.mxu0
      %v551 = vadd.f32 %v502, %v550
      %v552 = vpop.f32.mrf.mxu0
      %v553 = vadd.f32 %v504, %v552
      %554 = vmatmul.bf16.gmra.mxu0 %v364
      %v555 = vpop.f32.mrf.mxu0
      %v556 = vadd.f32 %v507, %v555
      %v557 = vpop.f32.mrf.mxu0
      %v558 = vadd.f32 %v509, %v557
      %559 = vmatmul.bf16.gmra.mxu0 %v366
      %v560 = vpop.f32.mrf.mxu0
      %v561 = vadd.f32 %v512, %v560
      %v562 = vpop.f32.mrf.mxu0
      %v563 = vadd.f32 %v514, %v562
      %564 = vmatmul.bf16.gmra.mxu0 %v368
      %v565 = vpop.f32.mrf.mxu0
      %v566 = vadd.f32 %v517, %v565
      %v567 = vpop.f32.mrf.mxu0
      %v568 = vadd.f32 %v519, %v567
      %569 = vmatmul.bf16.gmra.mxu0 %v370
      %v570 = vpop.f32.mrf.mxu0
      %v571 = vadd.f32 %v522, %v570
      %v572 = vpop.f32.mrf.mxu0
      %v573 = vadd.f32 %v524, %v572
      %574 = vmatmul.bf16.gmra.mxu0 %v372
      %v575 = vpop.f32.mrf.mxu0
      %v576 = vadd.f32 %v527, %v575
      %v577 = vpop.f32.mrf.mxu0
      %v578 = vadd.f32 %v529, %v577
      %579 = vmatmul.bf16.gmra.mxu0 %v374
      %v580 = vpop.f32.mrf.mxu0
      %v581 = vadd.f32 %v532, %v580
      %v582 = vpop.f32.mrf.mxu0
      %v583 = vadd.f32 %v534, %v582
      %584 = vdwg.mxu0
      %v585 = vadd.f32 %v247, %v546
      %v586 = vadd.f32 %v248, %v548
      %v587 = vadd.f32 %v249, %v551
      %v588 = vadd.f32 %v250, %v553
      %v589 = vadd.f32 %v251, %v556
      %v590 = vadd.f32 %v252, %v558
      %v591 = vadd.f32 %v253, %v561
      %v592 = vadd.f32 %v254, %v563
      %v593 = vadd.f32 %v255, %v566
      %v594 = vadd.f32 %v256, %v568
      %v595 = vadd.f32 %v257, %v571
      %v596 = vadd.f32 %v258, %v573
      %v597 = vadd.f32 %v259, %v576
      %v598 = vadd.f32 %v260, %v578
      %v599 = vadd.f32 %v261, %v581
      %v600 = vadd.f32 %v262, %v583
      %601 = vst [vmem:[#allocation2] sm:$0xff] %v585
      %602 = vst [vmem:[#allocation2 + $0x8] sm:$0xff] %v586
      %603 = vst [vmem:[#allocation2 + $0x10] sm:$0xff] %v587
      %604 = vst [vmem:[#allocation2 + $0x18] sm:$0xff] %v588
      %605 = vst [vmem:[#allocation2 + $0x20] sm:$0xff] %v589
      %606 = vst [vmem:[#allocation2 + $0x28] sm:$0xff] %v590
      %607 = vst [vmem:[#allocation2 + $0x30] sm:$0xff] %v591
      %608 = vst [vmem:[#allocation2 + $0x38] sm:$0xff] %v592
      %609 = vst [vmem:[#allocation2 + $0x40] sm:$0xff] %v593
      %610 = vst [vmem:[#allocation2 + $0x48] sm:$0xff] %v594
      %611 = vst [vmem:[#allocation2 + $0x50] sm:$0xff] %v595
      %612 = vst [vmem:[#allocation2 + $0x58] sm:$0xff] %v596
      %613 = vst [vmem:[#allocation2 + $0x60] sm:$0xff] %v597
      %614 = vst [vmem:[#allocation2 + $0x68] sm:$0xff] %v598
      %615 = vst [vmem:[#allocation2 + $0x70] sm:$0xff] %v599
      %616 = vst [vmem:[#allocation2 + $0x78] sm:$0xff] %v600
      // Predicated region
      $region37: #{sgc_forward.5} parent=31 // pred_check
        %p617 = pneg %p227
      $region38: #{sgc_forward.5} parent=31 // pred_check_branch
        %619 = sbr.rel (%p617) target = $region40
      $region39: #{sgc_forward.5} parent=31 // pred_region
        %v620 = vld [vmem:[#allocation2] sm:$0xff]
        %v621 = vld [vmem:[#allocation2 + $0x8] sm:$0xff]
        %v622 = vld [vmem:[#allocation2 + $0x10] sm:$0xff]
        %v623 = vld [vmem:[#allocation2 + $0x18] sm:$0xff]
        %v624 = vld [vmem:[#allocation2 + $0x20] sm:$0xff]
        %v625 = vld [vmem:[#allocation2 + $0x28] sm:$0xff]
        %v626 = vld [vmem:[#allocation2 + $0x30] sm:$0xff]
        %v627 = vld [vmem:[#allocation2 + $0x38] sm:$0xff]
        %v628 = vld [vmem:[#allocation2 + $0x40] sm:$0xff]
        %v629 = vld [vmem:[#allocation2 + $0x48] sm:$0xff]
        %v630 = vld [vmem:[#allocation2 + $0x50] sm:$0xff]
        %v631 = vld [vmem:[#allocation2 + $0x58] sm:$0xff]
        %v632 = vld [vmem:[#allocation2 + $0x60] sm:$0xff]
        %v633 = vld [vmem:[#allocation2 + $0x68] sm:$0xff]
        %v634 = vld [vmem:[#allocation2 + $0x70] sm:$0xff]
        %v635 = vld [vmem:[#allocation2 + $0x78] sm:$0xff]
        %v636 = vld [vmem:[%s2] sm:$0x1]
        %v638 = vperm.slane %v636, 0
        %v640 = vadd.f32 %v620, %v638
        %v641 = vadd.f32 %v621, %v638
        %v642 = vadd.f32 %v622, %v638
        %v643 = vadd.f32 %v623, %v638
        %v644 = vadd.f32 %v624, %v638
        %v645 = vadd.f32 %v625, %v638
        %v646 = vadd.f32 %v626, %v638
        %v647 = vadd.f32 %v627, %v638
        %v648 = vadd.f32 %v628, %v638
        %v649 = vadd.f32 %v629, %v638
        %v650 = vadd.f32 %v630, %v638
        %v651 = vadd.f32 %v631, %v638
        %v652 = vadd.f32 %v632, %v638
        %v653 = vadd.f32 %v633, %v638
        %v654 = vadd.f32 %v634, %v638
        %v655 = vadd.f32 %v635, %v638
        %656 = vst [vmem:[%s225] sm:$0xff] %v640
        %657 = vst [vmem:[%s225 + $0x8] sm:$0xff] %v641
        %658 = vst [vmem:[%s225 + $0x10] sm:$0xff] %v642
        %659 = vst [vmem:[%s225 + $0x18] sm:$0xff] %v643
        %660 = vst [vmem:[%s225 + $0x20] sm:$0xff] %v644
        %661 = vst [vmem:[%s225 + $0x28] sm:$0xff] %v645
        %662 = vst [vmem:[%s225 + $0x30] sm:$0xff] %v646
        %663 = vst [vmem:[%s225 + $0x38] sm:$0xff] %v647
        %664 = vst [vmem:[%s225 + $0x40] sm:$0xff] %v648
        %665 = vst [vmem:[%s225 + $0x48] sm:$0xff] %v649
        %666 = vst [vmem:[%s225 + $0x50] sm:$0xff] %v650
        %667 = vst [vmem:[%s225 + $0x58] sm:$0xff] %v651
        %668 = vst [vmem:[%s225 + $0x60] sm:$0xff] %v652
        %669 = vst [vmem:[%s225 + $0x68] sm:$0xff] %v653
        %670 = vst [vmem:[%s225 + $0x70] sm:$0xff] %v654
        %671 = vst [vmem:[%s225 + $0x78] sm:$0xff] %v655
      $region40: #{sgc_forward.5} parent=31 // pred_fallthru
        _
      %s672 = smul.u32 16, %s18
      %p673 = scmp.lt.s32.totalorder %s672, 31
      %s674 = scalar_select %p673, %s672, 31
      %s675 = smul.addr %s674, 8
      %s676 = scalar_lea.vmem %s3, %s675
      // Predicated region
      $region41: #{sgc_forward.5} parent=31 // pred_check
        %p677 = pneg %p119
      $region42: #{sgc_forward.5} parent=31 // pred_check_branch
        %679 = sbr.rel (%p677) target = $region44
      $region43: #{sgc_forward.5} parent=31 // pred_region
        %s680 = smul.u32 16, %s18
      $region44: #{sgc_forward.5} parent=31 // pred_fallthru
        _
    $region32: #{sgc_forward.5} parent=5 // pred_fallthru
      _
    %p681 = scmp.le.s32.totalorder 2, %s9
    // Predicated region
    $region45: #{sgc_forward.5} parent=5 // pred_check
      %p682 = pneg %p681
    $region46: #{sgc_forward.5} parent=5 // pred_check_branch
      %684 = sbr.rel (%p682) target = $region48
    $region47: #{sgc_forward.5} parent=5 // pred_region
      %s685 = ssub.s32 %s9, 2
      // Predicated region
      $region49: #{sgc_forward.5} parent=47 // pred_check
        %p686 = pneg %p125
      $region50: #{sgc_forward.5} parent=47 // pred_check_branch
        %688 = sbr.rel (%p686) target = $region52
      $region51: #{sgc_forward.5} parent=47 // pred_region
        %s689 = smul.u32 16, %s20
        %p690 = scmp.lt.s32.totalorder %s689, 31
        %s691 = scalar_select %p690, %s689, 31
        %s692 = smul.addr %s691, 8
        %s693 = scalar_lea.vmem %s3, %s692
      $region52: #{sgc_forward.5} parent=47 // pred_fallthru
        _
    $region48: #{sgc_forward.5} parent=5 // pred_fallthru
      _
  $region6: #{sgc_forward.5} parent=0 // loop_footer
    %s13 = sadd.s32 1, %s9
  $region7: #{sgc_forward.5} parent=0 // loop_footer_branch
    %8 = sbr.rel target = $region3
  $region8: #{sgc_forward.5} parent=0 // loop_exit
    _

</llo_original>
